<compile_context>
chip_gen: v7x
topology: tpu7x:2x2x1
jax: 0.10.0
libtpu: 0.0.40
codegen_flags: <defaults>
</compile_context>

<pallas_src>
import functools

import jax
import jax.numpy as jnp
from jax.experimental import pallas as pl
from jax.experimental.pallas import tpu as pltpu

N_STATES = 8     # LunarLander-v2 observation dim
N_ACTIONS = 4    # LunarLander-v2 action dim
N_PAD = 128      # lane-padded feature width used inside the kernel
TILE_B = 512     # batch tile (multiple of 8 sublanes); 2+ tiles per call


def _mlp_kernel(x_ref, w_ref, b_ref, out_ref, xpad_ref):
    """fc1 -> relu -> fc2 -> relu -> out.

    x_ref    : (TILE_B, N_STATES) f32   narrow activations straight from HBM
    w_ref    : (3, 128, 128)      bf16  packed weight slab, [in, out] layout
    b_ref    : (3, 128)           f32   packed bias slab (zero in padded lanes)
    out_ref  : (TILE_B, N_ACTIONS) f32  narrow Q-value output
    xpad_ref : (TILE_B, 128)      f32   VMEM scratch: lane-padded activations
    """
    # Zero-extend the narrow activations to 128 lanes in VMEM scratch so the first
    # matmul is a clean (TILE_B,128)x(128,128) MXU op.  Re-zeroed every step: the
    # batch grid axis is "parallel", so no cross-iteration scratch state is assumed.
    xpad_ref[...] = jnp.zeros_like(xpad_ref)
    xpad_ref[:, :N_STATES] = x_ref[...]
    x = xpad_ref[...]                 # (TILE_B, 128) f32
    b = b_ref[...]                    # (3, 128) f32

    # fc1 + relu  (bf16 operands on the MXU, f32 accumulation)
    h = jnp.dot(x.astype(jnp.bfloat16), w_ref[0],
                preferred_element_type=jnp.float32) + b[0:1, :]
    h = jnp.maximum(h, 0.0)

    # fc2 + relu
    h = jnp.dot(h.astype(jnp.bfloat16), w_ref[1],
                preferred_element_type=jnp.float32) + b[1:2, :]
    h = jnp.maximum(h, 0.0)

    # out (action values, no activation) -- keep only the N_ACTIONS meaningful lanes
    y = jnp.dot(h.astype(jnp.bfloat16), w_ref[2],
                preferred_element_type=jnp.float32) + b[2:3, :]
    out_ref[...] = y[:, :N_ACTIONS].astype(out_ref.dtype)


def nn_forward(x, w_packed, b_packed, *, tile_b=TILE_B):
    """Pallas forward pass of the 3-layer MLP.

    x        : [batch, N_STATES] float
    w_packed : [3, 128, 128] bf16 packed weights (from pack_params)
    b_packed : [3, 128]      f32  packed biases  (from pack_params)
    returns  : [batch, N_ACTIONS] f32
    """
    batch = x.shape[0]
    # Fixed tile, power-of-two tile-count bucket (min 2) -> stable compiled shapes
    # across varying runtime batch sizes, and >= 2 parallel steps for v7x megacore.
    n_tiles = max(2, pl.next_power_of_2(pl.cdiv(max(batch, 1), tile_b)))
    padded_b = n_tiles * tile_b

    # Only pad the batch dim; features stay narrow (N_STATES lanes) in HBM.
    x_pad = jnp.zeros((padded_b, N_STATES), jnp.float32)
    x_pad = x_pad.at[:batch, :].set(x.astype(jnp.float32))

    out = pl.pallas_call(
        _mlp_kernel,
        out_shape=jax.ShapeDtypeStruct((padded_b, N_ACTIONS), jnp.float32),
        grid=(n_tiles,),
        in_specs=[
            # batch-tiled narrow activations: pipelined across the grid
            pl.BlockSpec((tile_b, N_STATES), lambda i: (i, 0)),
            # packed weights / biases: constant index_map -> resident in VMEM
            pl.BlockSpec((3, N_PAD, N_PAD), lambda i: (0, 0, 0)),
            pl.BlockSpec((3, N_PAD), lambda i: (0, 0)),
        ],
        out_specs=pl.BlockSpec((tile_b, N_ACTIONS), lambda i: (i, 0)),
        scratch_shapes=[pltpu.VMEM((tile_b, N_PAD), jnp.float32)],
        compiler_params=pltpu.CompilerParams(
            dimension_semantics=("parallel",),  # shard batch tiles across TCs (v7x megacore)
        ),
    )(x_pad, w_packed, b_packed)

    return out[:batch, :]


def init_linear(key, fan_in, fan_out):
    """Mirror nn.Linear default init: uniform(-1/sqrt(fan_in), 1/sqrt(fan_in)).

    Weight is returned as [fan_in, fan_out] (already transposed for y = x @ W + b).
    """
    kw, kb = jax.random.split(key)
    bound = 1.0 / jnp.sqrt(jnp.float32(fan_in))
    w = jax.random.uniform(kw, (fan_in, fan_out), jnp.float32, -bound, bound)
    b = jax.random.uniform(kb, (fan_out,), jnp.float32, -bound, bound)
    return w, b


def pack_params(layers):
    """Pack per-layer (w [in,out], b [out]) into one bf16 weight slab + one f32 bias slab,
    zero-padded to 128 lanes/rows."""
    w_slab = jnp.zeros((3, N_PAD, N_PAD), jnp.float32)
    b_slab = jnp.zeros((3, N_PAD), jnp.float32)
    for l, (w, b) in enumerate(layers):
        fi, fo = w.shape
        w_slab = w_slab.at[l, :fi, :fo].set(w)
        b_slab = b_slab.at[l, :fo].set(b)
    return w_slab.astype(jnp.bfloat16), b_slab


if __name__ == "__main__":
    fc1_size, fc2_size = 32, 32
    batch = 2

    key = jax.random.PRNGKey(0)
    k_x, k1, k2, k3 = jax.random.split(key, 4)

    x = jax.random.normal(k_x, (batch, N_STATES), jnp.float32)
    w1, b1 = init_linear(k1, N_STATES, fc1_size)
    w2, b2 = init_linear(k2, fc1_size, fc2_size)
    w3, b3 = init_linear(k3, fc2_size, N_ACTIONS)

    w_packed, b_packed = pack_params([(w1, b1), (w2, b2), (w3, b3)])

    fwd = jax.jit(functools.partial(nn_forward, tile_b=TILE_B))
    action_values = fwd(x, w_packed, b_packed)
    action_values = jax.block_until_ready(action_values)
    assert action_values.shape == (batch, N_ACTIONS)

    # Reference 1: identical precision path (bf16 matmul operands, f32 accumulate).
    def ref_bf16(xv):
        h = jnp.zeros((xv.shape[0], N_PAD), jnp.float32).at[:, :N_STATES].set(xv)
        for l in range(3):
            h_next = jnp.dot(h.astype(jnp.bfloat16), w_packed[l],
                             preferred_element_type=jnp.float32) + b_packed[l]
            h = jnp.maximum(h_next, 0.0) if l < 2 else h_next
        return h[:, :N_ACTIONS]

    ref_matched = ref_bf16(x)
    assert jnp.allclose(action_values, ref_matched, atol=1e-4, rtol=1e-4)

    # Reference 2: pure-f32 un-packed math (loose tolerance for the bf16 weight cast).
    h1 = jnp.maximum(x @ w1 + b1, 0.0)
    h2 = jnp.maximum(h1 @ w2 + b2, 0.0)
    ref_f32 = h2 @ w3 + b3
    assert jnp.allclose(action_values, ref_f32, atol=5e-2, rtol=5e-2)

    print("KERNEL_OK")
</pallas_src>

<mosaic_0001>
module attributes {stable_mosaic.version = 11 : i64} {
  func.func @_mlp_kernel(%arg0: i32, %arg1: memref<512x8xf32, #tpu.memory_space<vmem>>, %arg2: memref<3x128x128xbf16, #tpu.memory_space<vmem>>, %arg3: memref<3x128xf32, #tpu.memory_space<vmem>>, %arg4: memref<512x4xf32, #tpu.memory_space<vmem>>, %arg5: memref<512x128xf32, #tpu.memory_space<vmem>>) attributes {dimension_semantics = [#tpu.dimension_semantics<parallel>], iteration_bounds = array<i64: 2>, scalar_prefetch = 0 : i64, scratch_operands = 1 : i64, tpu.core_type = #tpu.core_type<tc>, window_params = [{transform_indices = @transform_0, window_bounds = array<i64: 512, 8>}, {pipeline_mode = #tpu.pipeline_mode<synchronous>, transform_indices = @transform_1, window_bounds = array<i64: 3, 128, 128>}, {pipeline_mode = #tpu.pipeline_mode<synchronous>, transform_indices = @transform_2, window_bounds = array<i64: 3, 128>}, {transform_indices = @transform_3, window_bounds = array<i64: 512, 4>}]} {
    %cst = arith.constant 0.000000e+00 : f32
    %0 = vector.broadcast %cst : f32 to vector<512x128xf32>
    %c0 = arith.constant 0 : index
    %c0_0 = arith.constant 0 : index
    %1 = vector.load %arg5[%c0, %c0_0] : memref<512x128xf32, #tpu.memory_space<vmem>>, vector<512x128xf32>
    tpu.vector_store %arg5[%c0, %c0_0], %0 {strides = array<i32>} : memref<512x128xf32, #tpu.memory_space<vmem>>, vector<512x128xf32>,
    %c0_1 = arith.constant 0 : index
    %c0_2 = arith.constant 0 : index
    %2 = vector.load %arg1[%c0_1, %c0_2] : memref<512x8xf32, #tpu.memory_space<vmem>>, vector<512x8xf32>
    %c0_3 = arith.constant 0 : index
    %c0_4 = arith.constant 0 : index
    %3 = vector.load %arg5[%c0_3, %c0_4] : memref<512x128xf32, #tpu.memory_space<vmem>>, vector<512x8xf32>
    tpu.vector_store %arg5[%c0_3, %c0_4], %2 {strides = array<i32>} : memref<512x128xf32, #tpu.memory_space<vmem>>, vector<512x8xf32>,
    %c0_5 = arith.constant 0 : index
    %c0_6 = arith.constant 0 : index
    %4 = vector.load %arg5[%c0_5, %c0_6] : memref<512x128xf32, #tpu.memory_space<vmem>>, vector<512x128xf32>
    %c0_7 = arith.constant 0 : index
    %c0_8 = arith.constant 0 : index
    %5 = vector.load %arg3[%c0_7, %c0_8] : memref<3x128xf32, #tpu.memory_space<vmem>>, vector<3x128xf32>
    %6 = arith.truncf %4 : vector<512x128xf32> to vector<512x128xbf16>
    %c0_9 = arith.constant 0 : index
    %c0_10 = arith.constant 0 : index
    %c0_11 = arith.constant 0 : index
    %7 = vector.load %arg2[%c0_9, %c0_10, %c0_11] : memref<3x128x128xbf16, #tpu.memory_space<vmem>>, vector<1x128x128xbf16>
    %8 = vector.shape_cast %7 : vector<1x128x128xbf16> to vector<128x128xbf16>
    %cst_12 = arith.constant dense<0.000000e+00> : vector<512x128xf32>
    %9 = tpu.matmul %6, %8, %cst_12 {dimension_numbers = #tpu.dot_dimension_numbers<[1], [0], [0], [1], [0, 0, 1, 1], [], []>} : vector<512x128xbf16>, vector<128x128xbf16>, vector<512x128xf32> -> vector<512x128xf32>
    %10 = vector.extract_strided_slice %5 {offsets = [0, 0], sizes = [1, 128], strides = [1, 1]} : vector<3x128xf32> to vector<1x128xf32>
    %11 = vector.broadcast %10 : vector<1x128xf32> to vector<512x128xf32>
    %12 = arith.addf %9, %11 : vector<512x128xf32>
    %cst_13 = arith.constant 0.000000e+00 : f32
    %13 = vector.broadcast %cst_13 : f32 to vector<512x128xf32>
    %14 = arith.maximumf %12, %13 : vector<512x128xf32>
    %15 = arith.truncf %14 : vector<512x128xf32> to vector<512x128xbf16>
    %c1 = arith.constant 1 : index
    %c0_14 = arith.constant 0 : index
    %c0_15 = arith.constant 0 : index
    %16 = vector.load %arg2[%c1, %c0_14, %c0_15] : memref<3x128x128xbf16, #tpu.memory_space<vmem>>, vector<1x128x128xbf16>
    %17 = vector.shape_cast %16 : vector<1x128x128xbf16> to vector<128x128xbf16>
    %cst_16 = arith.constant dense<0.000000e+00> : vector<512x128xf32>
    %18 = tpu.matmul %15, %17, %cst_16 {dimension_numbers = #tpu.dot_dimension_numbers<[1], [0], [0], [1], [0, 0, 1, 1], [], []>} : vector<512x128xbf16>, vector<128x128xbf16>, vector<512x128xf32> -> vector<512x128xf32>
    %19 = vector.extract_strided_slice %5 {offsets = [1, 0], sizes = [1, 128], strides = [1, 1]} : vector<3x128xf32> to vector<1x128xf32>
    %20 = vector.broadcast %19 : vector<1x128xf32> to vector<512x128xf32>
    %21 = arith.addf %18, %20 : vector<512x128xf32>
    %cst_17 = arith.constant 0.000000e+00 : f32
    %22 = vector.broadcast %cst_17 : f32 to vector<512x128xf32>
    %23 = arith.maximumf %21, %22 : vector<512x128xf32>
    %24 = arith.truncf %23 : vector<512x128xf32> to vector<512x128xbf16>
    %c2 = arith.constant 2 : index
    %c0_18 = arith.constant 0 : index
    %c0_19 = arith.constant 0 : index
    %25 = vector.load %arg2[%c2, %c0_18, %c0_19] : memref<3x128x128xbf16, #tpu.memory_space<vmem>>, vector<1x128x128xbf16>
    %26 = vector.shape_cast %25 : vector<1x128x128xbf16> to vector<128x128xbf16>
    %cst_20 = arith.constant dense<0.000000e+00> : vector<512x128xf32>
    %27 = tpu.matmul %24, %26, %cst_20 {dimension_numbers = #tpu.dot_dimension_numbers<[1], [0], [0], [1], [0, 0, 1, 1], [], []>} : vector<512x128xbf16>, vector<128x128xbf16>, vector<512x128xf32> -> vector<512x128xf32>
    %28 = vector.extract_strided_slice %5 {offsets = [2, 0], sizes = [1, 128], strides = [1, 1]} : vector<3x128xf32> to vector<1x128xf32>
    %29 = vector.broadcast %28 : vector<1x128xf32> to vector<512x128xf32>
    %30 = arith.addf %27, %29 : vector<512x128xf32>
    %31 = vector.extract_strided_slice %30 {offsets = [0, 0], sizes = [512, 4], strides = [1, 1]} : vector<512x128xf32> to vector<512x4xf32>
    %c0_21 = arith.constant 0 : index
    %c0_22 = arith.constant 0 : index
    %32 = vector.load %arg4[%c0_21, %c0_22] : memref<512x4xf32, #tpu.memory_space<vmem>>, vector<512x4xf32>
    tpu.vector_store %arg4[%c0_21, %c0_22], %31 {strides = array<i32>} : memref<512x4xf32, #tpu.memory_space<vmem>>, vector<512x4xf32>,
    return
  }
  func.func @transform_0(%arg0: i32) -> (i32, i32) {
    %c0_i32 = arith.constant 0 : i32
    %c0_i32_0 = arith.constant 0 : i32
    return %arg0, %c0_i32 : i32, i32
  }
  func.func @transform_1(%arg0: i32) -> (i32, i32, i32) {
    %c0_i32 = arith.constant 0 : i32
    %c0_i32_0 = arith.constant 0 : i32
    %c0_i32_1 = arith.constant 0 : i32
    %c0_i32_2 = arith.constant 0 : i32
    return %c0_i32, %c0_i32_0, %c0_i32_1 : i32, i32, i32
  }
  func.func @transform_2(%arg0: i32) -> (i32, i32) {
    %c0_i32 = arith.constant 0 : i32
    %c0_i32_0 = arith.constant 0 : i32
    %c0_i32_1 = arith.constant 0 : i32
    return %c0_i32, %c0_i32_0 : i32, i32
  }
  func.func @transform_3(%arg0: i32) -> (i32, i32) {
    %c0_i32 = arith.constant 0 : i32
    %c0_i32_0 = arith.constant 0 : i32
    return %arg0, %c0_i32 : i32, i32
  }
}

</mosaic_0001>

<llo_original>
// kernel: nn_forward.1
$region0: #{nn_forward.1}
  #allocation0 [shape = 'u32[]', space=smem, size = 0x4, offset = 0x4, fixed_abs, tag = 'smem constant byte address 0x4 - core index']
  #allocation1 [shape = 'u32[144,128]{1,0:T(1,128)}', space=vmem, size = 0x12000, scoped, tag = 'internal scratch']
  #allocation2 [shape = 'f32[512,128]{1,0:T(8,128)}', space=vmem, size = 0x40000, scoped, tag = 'scratch operand']
  %s0 = inlined_call_operand.vmem [shape: f32[1024,8], index: 0, kind: input, shape index: {}]
  %s1 = inlined_call_operand.vmem [shape: bf16[3,128,128], index: 1, kind: input, shape index: {}]
  %s2 = inlined_call_operand.vmem [shape: f32[3,128], index: 2, kind: input, shape index: {}]
  %s3 = inlined_call_operand.vmem [shape: f32[1024,4], index: 3, kind: output, shape index: {}]
  %s4 = sld [smem:[#allocation0]]
  $region45: #{nn_forward.1} parent=0
    _
  %s6 = ssub.s32 1, %s4
  %s7 = scalar_select 0, %s6, %s4
  loop: start=0, step=1, limit=4
  $region2: #{nn_forward.1} parent=0 // loop_pre_header
    _
  $region3: #{nn_forward.1} parent=0 // loop_header
    %s9 = sphi 0, %s13
    %p10 = scmp.ge.s32.totalorder %s9, 4
    %s19 = sphi 0, %s21
    %s22 = sphi 0, %s19
    %s23 = sphi 0, %s22
    %s39 = sphi 0, %s23
    %s43 = sphi 0, %s43
    %s45 = sphi 0, %s43
    %s46 = sphi 0, %s45
    %s60 = sphi 0, %s46
    %s64 = sphi 0, %s64
    %s66 = sphi 0, %s64
    %s67 = sphi 0, %s66
    %s81 = sphi 0, %s67
    %s87 = sphi 0, %s89
    %s90 = sphi 0, %s87
    %s91 = sphi 0, %s90
    %s107 = sphi 0, %s91
  $region4: #{nn_forward.1} parent=0 // loop_header_branch
    %12 = sbr.rel (%p10) target = $region8
  $region5: #{nn_forward.1} parent=0 // loop_body
    %s14 = ssub.s32 %s9, 1
    %s15 = ssub.s32 %s9, 2
    %s16 = sadd.s32 %s9, 1
    %s17 = ssub.s32 %s9, %s16
    %p18 = scmp.eq.s32.totalorder %s17, 0
    %s20 = sadd.s32 %s19, 1
    %s21 = scalar_select %p18, %s19, %s20
    %p24 = pneg %p18
    %p25 = scmp.eq.s32.totalorder %s9, 1
    %p26 = por %p24, %p25
    %p27 = scmp.ne.s32.totalorder %s19, %s22
    %p28 = scmp.eq.s32.totalorder %s9, 0
    %p29 = por %p27, %p28
    %p30 = scmp.ne.s32.totalorder %s19, %s22
    %p31 = scmp.eq.s32.totalorder %s14, 1
    %p32 = por %p30, %p31
    %p33 = scmp.ne.s32.totalorder %s22, %s23
    %p34 = scmp.eq.s32.totalorder %s14, 0
    %p35 = por %p33, %p34
    %p36 = scmp.ne.s32.totalorder %s22, %s23
    %p37 = scmp.eq.s32.totalorder %s15, 1
    %p38 = por %p36, %p37
    %p40 = scmp.ne.s32.totalorder %s23, %s39
    %p41 = scmp.eq.s32.totalorder %s15, 0
    %p42 = por %p40, %p41
    %s44 = sadd.s32 %s43, 1
    %p47 = scmp.eq.s32.totalorder %s9, 1
    %p48 = scmp.ne.s32.totalorder %s43, %s45
    %p49 = scmp.eq.s32.totalorder %s9, 0
    %p50 = por %p48, %p49
    %p51 = scmp.ne.s32.totalorder %s43, %s45
    %p52 = scmp.eq.s32.totalorder %s14, 1
    %p53 = por %p51, %p52
    %p54 = scmp.ne.s32.totalorder %s45, %s46
    %p55 = scmp.eq.s32.totalorder %s14, 0
    %p56 = por %p54, %p55
    %p57 = scmp.ne.s32.totalorder %s45, %s46
    %p58 = scmp.eq.s32.totalorder %s15, 1
    %p59 = por %p57, %p58
    %p61 = scmp.ne.s32.totalorder %s46, %s60
    %p62 = scmp.eq.s32.totalorder %s15, 0
    %p63 = por %p61, %p62
    %s65 = sadd.s32 %s64, 1
    %p68 = scmp.eq.s32.totalorder %s9, 1
    %p69 = scmp.ne.s32.totalorder %s64, %s66
    %p70 = scmp.eq.s32.totalorder %s9, 0
    %p71 = por %p69, %p70
    %p72 = scmp.ne.s32.totalorder %s64, %s66
    %p73 = scmp.eq.s32.totalorder %s14, 1
    %p74 = por %p72, %p73
    %p75 = scmp.ne.s32.totalorder %s66, %s67
    %p76 = scmp.eq.s32.totalorder %s14, 0
    %p77 = por %p75, %p76
    %p78 = scmp.ne.s32.totalorder %s66, %s67
    %p79 = scmp.eq.s32.totalorder %s15, 1
    %p80 = por %p78, %p79
    %p82 = scmp.ne.s32.totalorder %s67, %s81
    %p83 = scmp.eq.s32.totalorder %s15, 0
    %p84 = por %p82, %p83
    %s85 = ssub.s32 %s9, %s16
    %p86 = scmp.eq.s32.totalorder %s85, 0
    %s88 = sadd.s32 %s87, 1
    %s89 = scalar_select %p86, %s87, %s88
    %p92 = pneg %p86
    %p93 = scmp.eq.s32.totalorder %s9, 1
    %p94 = por %p92, %p93
    %p95 = scmp.ne.s32.totalorder %s87, %s90
    %p96 = scmp.eq.s32.totalorder %s9, 0
    %p97 = por %p95, %p96
    %p98 = scmp.ne.s32.totalorder %s87, %s90
    %p99 = scmp.eq.s32.totalorder %s14, 1
    %p100 = por %p98, %p99
    %p101 = scmp.ne.s32.totalorder %s90, %s91
    %p102 = scmp.eq.s32.totalorder %s14, 0
    %p103 = por %p101, %p102
    %p104 = scmp.ne.s32.totalorder %s90, %s91
    %p105 = scmp.eq.s32.totalorder %s15, 1
    %p106 = por %p104, %p105
    %p108 = scmp.ne.s32.totalorder %s91, %s107
    %p109 = scmp.eq.s32.totalorder %s15, 0
    %p110 = por %p108, %p109
    %p111 = scmp.le.s32.totalorder 1, %s9
    %p112 = scmp.lt.s32.totalorder %s9, 3
    %p113 = pnand %p111, %p112
    %p114 = pneg %p113
    // Predicated region
    $region9: #{nn_forward.1} parent=5 // pred_check
      _
    $region10: #{nn_forward.1} parent=5 // pred_check_branch
      %116 = sbr.rel (%p113) target = $region12
    $region11: #{nn_forward.1} parent=5 // pred_region
      %s117 = ssub.s32 %s9, 1
      // Predicated region
      $region13: #{nn_forward.1} parent=11 // pred_check
        %p118 = pneg %p56
      $region14: #{nn_forward.1} parent=11 // pred_check_branch
        %120 = sbr.rel (%p118) target = $region16
      $region15: #{nn_forward.1} parent=11 // pred_region
        _
      $region16: #{nn_forward.1} parent=11 // pred_fallthru
        _
      // Predicated region
      $region17: #{nn_forward.1} parent=11 // pred_check
        %p121 = pneg %p77
      $region18: #{nn_forward.1} parent=11 // pred_check_branch
        %123 = sbr.rel (%p121) target = $region20
      $region19: #{nn_forward.1} parent=11 // pred_region
        _
      $region20: #{nn_forward.1} parent=11 // pred_fallthru
        _
    $region12: #{nn_forward.1} parent=5 // pred_fallthru
      _
    %p124 = scmp.lt.s32.totalorder %s9, 2
    // Predicated region
    $region21: #{nn_forward.1} parent=5 // pred_check
      %p125 = pneg %p124
    $region22: #{nn_forward.1} parent=5 // pred_check_branch
      %127 = sbr.rel (%p125) target = $region24
    $region23: #{nn_forward.1} parent=5 // pred_region
      // Predicated region
      $region25: #{nn_forward.1} parent=23 // pred_check
        %p128 = pneg %p29
      $region26: #{nn_forward.1} parent=23 // pred_check_branch
        %130 = sbr.rel (%p128) target = $region28
      $region27: #{nn_forward.1} parent=23 // pred_region
        %s131 = smul.u32 64, %s9
        %p132 = scmp.lt.s32.totalorder %s131, 127
        %s133 = scalar_select %p132, %s131, 127
        %s134 = smul.addr %s133, 8
        %s135 = scalar_lea.vmem %s0, %s134
        %s136 = smul.u32 64, %s9
      $region28: #{nn_forward.1} parent=23 // pred_fallthru
        _
    $region24: #{nn_forward.1} parent=5 // pred_fallthru
      _
    %p137 = scmp.le.s32.totalorder 1, %s9
    %p138 = scmp.lt.s32.totalorder %s9, 3
    %p139 = pnand %p137, %p138
    %p140 = pneg %p139
    // Predicated region
    $region29: #{nn_forward.1} parent=5 // pred_check
      _
    $region30: #{nn_forward.1} parent=5 // pred_check_branch
      %142 = sbr.rel (%p139) target = $region32
    $region31: #{nn_forward.1} parent=5 // pred_region
      %s143 = ssub.s32 %s9, 1
      %s144 = smul.u32 64, %s14
      %p145 = scmp.lt.s32.totalorder %s144, 127
      %s146 = scalar_select %p145, %s144, 127
      %s147 = smul.addr %s146, 8
      %s148 = scalar_lea.vmem %s0, %s147
      %p149 = pneg %p35
      %p150 = pneg %p32
      %p151 = pneg %p56
      %p152 = pneg %p53
      %p153 = pneg %p77
      %p154 = pneg %p74
      %p155 = pneg %p103
      %p156 = pneg %p100
      %s157 = smul.u32 64, %s14
      %p158 = scmp.lt.s32.totalorder %s157, 127
      %s159 = scalar_select %p158, %s157, 127
      %s160 = smul.addr %s159, 8
      %s161 = scalar_lea.vmem %s3, %s160
      %s162 = smul.u32 64, %s14
      %p163 = scmp.lt.s32.totalorder %s162, 127
      %s164 = scalar_select %p163, %s162, 127
      %s165 = smul.addr %s164, 8
      %s166 = scalar_lea.vmem %s0, %s165
      %s167 = smul.u32 64, %s14
      %s168 = smul.u32 64, %s14
      %p169 = scmp.lt.s32.totalorder %s168, 127
      %s170 = scalar_select %p169, %s168, 127
      %s171 = smul.addr %s170, 8
      %s172 = scalar_lea.vmem %s3, %s171
      %s173 = smul.u32 64, %s14
      %175 = vst [vmem:[#allocation2] sm:$0xff] 0.0
      %176 = vst [vmem:[#allocation2 + $0x8] sm:$0xff] 0.0
      %177 = vst [vmem:[#allocation2 + $0x10] sm:$0xff] 0.0
      %178 = vst [vmem:[#allocation2 + $0x18] sm:$0xff] 0.0
      %179 = vst [vmem:[#allocation2 + $0x20] sm:$0xff] 0.0
      %180 = vst [vmem:[#allocation2 + $0x28] sm:$0xff] 0.0
      %181 = vst [vmem:[#allocation2 + $0x30] sm:$0xff] 0.0
      %182 = vst [vmem:[#allocation2 + $0x38] sm:$0xff] 0.0
      %183 = vst [vmem:[#allocation2 + $0x40] sm:$0xff] 0.0
      %184 = vst [vmem:[#allocation2 + $0x48] sm:$0xff] 0.0
      %185 = vst [vmem:[#allocation2 + $0x50] sm:$0xff] 0.0
      %186 = vst [vmem:[#allocation2 + $0x58] sm:$0xff] 0.0
      %187 = vst [vmem:[#allocation2 + $0x60] sm:$0xff] 0.0
      %188 = vst [vmem:[#allocation2 + $0x68] sm:$0xff] 0.0
      %189 = vst [vmem:[#allocation2 + $0x70] sm:$0xff] 0.0
      %190 = vst [vmem:[#allocation2 + $0x78] sm:$0xff] 0.0
      %191 = vst [vmem:[#allocation2 + $0x80] sm:$0xff] 0.0
      %192 = vst [vmem:[#allocation2 + $0x88] sm:$0xff] 0.0
      %193 = vst [vmem:[#allocation2 + $0x90] sm:$0xff] 0.0
      %194 = vst [vmem:[#allocation2 + $0x98] sm:$0xff] 0.0
      %195 = vst [vmem:[#allocation2 + $0xa0] sm:$0xff] 0.0
      %196 = vst [vmem:[#allocation2 + $0xa8] sm:$0xff] 0.0
      %197 = vst [vmem:[#allocation2 + $0xb0] sm:$0xff] 0.0
      %198 = vst [vmem:[#allocation2 + $0xb8] sm:$0xff] 0.0
      %199 = vst [vmem:[#allocation2 + $0xc0] sm:$0xff] 0.0
      %200 = vst [vmem:[#allocation2 + $0xc8] sm:$0xff] 0.0
      %201 = vst [vmem:[#allocation2 + $0xd0] sm:$0xff] 0.0
      %202 = vst [vmem:[#allocation2 + $0xd8] sm:$0xff] 0.0
      %203 = vst [vmem:[#allocation2 + $0xe0] sm:$0xff] 0.0
      %204 = vst [vmem:[#allocation2 + $0xe8] sm:$0xff] 0.0
      %205 = vst [vmem:[#allocation2 + $0xf0] sm:$0xff] 0.0
      %206 = vst [vmem:[#allocation2 + $0xf8] sm:$0xff] 0.0
      %207 = vst [vmem:[#allocation2 + $0x100] sm:$0xff] 0.0
      %208 = vst [vmem:[#allocation2 + $0x108] sm:$0xff] 0.0
      %209 = vst [vmem:[#allocation2 + $0x110] sm:$0xff] 0.0
      %210 = vst [vmem:[#allocation2 + $0x118] sm:$0xff] 0.0
      %211 = vst [vmem:[#allocation2 + $0x120] sm:$0xff] 0.0
      %212 = vst [vmem:[#allocation2 + $0x128] sm:$0xff] 0.0
      %213 = vst [vmem:[#allocation2 + $0x130] sm:$0xff] 0.0
      %214 = vst [vmem:[#allocation2 + $0x138] sm:$0xff] 0.0
      %215 = vst [vmem:[#allocation2 + $0x140] sm:$0xff] 0.0
      %216 = vst [vmem:[#allocation2 + $0x148] sm:$0xff] 0.0
      %217 = vst [vmem:[#allocation2 + $0x150] sm:$0xff] 0.0
      %218 = vst [vmem:[#allocation2 + $0x158] sm:$0xff] 0.0
      %219 = vst [vmem:[#allocation2 + $0x160] sm:$0xff] 0.0
      %220 = vst [vmem:[#allocation2 + $0x168] sm:$0xff] 0.0
      %221 = vst [vmem:[#allocation2 + $0x170] sm:$0xff] 0.0
      %222 = vst [vmem:[#allocation2 + $0x178] sm:$0xff] 0.0
      %223 = vst [vmem:[#allocation2 + $0x180] sm:$0xff] 0.0
      %224 = vst [vmem:[#allocation2 + $0x188] sm:$0xff] 0.0
      %225 = vst [vmem:[#allocation2 + $0x190] sm:$0xff] 0.0
      %226 = vst [vmem:[#allocation2 + $0x198] sm:$0xff] 0.0
      %227 = vst [vmem:[#allocation2 + $0x1a0] sm:$0xff] 0.0
      %228 = vst [vmem:[#allocation2 + $0x1a8] sm:$0xff] 0.0
      %229 = vst [vmem:[#allocation2 + $0x1b0] sm:$0xff] 0.0
      %230 = vst [vmem:[#allocation2 + $0x1b8] sm:$0xff] 0.0
      %231 = vst [vmem:[#allocation2 + $0x1c0] sm:$0xff] 0.0
      %232 = vst [vmem:[#allocation2 + $0x1c8] sm:$0xff] 0.0
      %233 = vst [vmem:[#allocation2 + $0x1d0] sm:$0xff] 0.0
      %234 = vst [vmem:[#allocation2 + $0x1d8] sm:$0xff] 0.0
      %235 = vst [vmem:[#allocation2 + $0x1e0] sm:$0xff] 0.0
      %236 = vst [vmem:[#allocation2 + $0x1e8] sm:$0xff] 0.0
      %237 = vst [vmem:[#allocation2 + $0x1f0] sm:$0xff] 0.0
      %238 = vst [vmem:[#allocation2 + $0x1f8] sm:$0xff] 0.0
      %v239 = vld [vmem:[%s166] sm:$0xff]
      %v240 = vld [vmem:[%s166 + $0x8] sm:$0xff]
      %v241 = vld [vmem:[%s166 + $0x10] sm:$0xff]
      %v242 = vld [vmem:[%s166 + $0x18] sm:$0xff]
      %v243 = vld [vmem:[%s166 + $0x20] sm:$0xff]
      %v244 = vld [vmem:[%s166 + $0x28] sm:$0xff]
      %v245 = vld [vmem:[%s166 + $0x30] sm:$0xff]
      %v246 = vld [vmem:[%s166 + $0x38] sm:$0xff]
      %v247 = vld [vmem:[%s166 + $0x40] sm:$0xff]
      %v248 = vld [vmem:[%s166 + $0x48] sm:$0xff]
      %v249 = vld [vmem:[%s166 + $0x50] sm:$0xff]
      %v250 = vld [vmem:[%s166 + $0x58] sm:$0xff]
      %v251 = vld [vmem:[%s166 + $0x60] sm:$0xff]
      %v252 = vld [vmem:[%s166 + $0x68] sm:$0xff]
      %v253 = vld [vmem:[%s166 + $0x70] sm:$0xff]
      %v254 = vld [vmem:[%s166 + $0x78] sm:$0xff]
      %v255 = vld [vmem:[%s166 + $0x80] sm:$0xff]
      %v256 = vld [vmem:[%s166 + $0x88] sm:$0xff]
      %v257 = vld [vmem:[%s166 + $0x90] sm:$0xff]
      %v258 = vld [vmem:[%s166 + $0x98] sm:$0xff]
      %v259 = vld [vmem:[%s166 + $0xa0] sm:$0xff]
      %v260 = vld [vmem:[%s166 + $0xa8] sm:$0xff]
      %v261 = vld [vmem:[%s166 + $0xb0] sm:$0xff]
      %v262 = vld [vmem:[%s166 + $0xb8] sm:$0xff]
      %v263 = vld [vmem:[%s166 + $0xc0] sm:$0xff]
      %v264 = vld [vmem:[%s166 + $0xc8] sm:$0xff]
      %v265 = vld [vmem:[%s166 + $0xd0] sm:$0xff]
      %v266 = vld [vmem:[%s166 + $0xd8] sm:$0xff]
      %v267 = vld [vmem:[%s166 + $0xe0] sm:$0xff]
      %v268 = vld [vmem:[%s166 + $0xe8] sm:$0xff]
      %v269 = vld [vmem:[%s166 + $0xf0] sm:$0xff]
      %v270 = vld [vmem:[%s166 + $0xf8] sm:$0xff]
      %v271 = vld [vmem:[%s166 + $0x100] sm:$0xff]
      %v272 = vld [vmem:[%s166 + $0x108] sm:$0xff]
      %v273 = vld [vmem:[%s166 + $0x110] sm:$0xff]
      %v274 = vld [vmem:[%s166 + $0x118] sm:$0xff]
      %v275 = vld [vmem:[%s166 + $0x120] sm:$0xff]
      %v276 = vld [vmem:[%s166 + $0x128] sm:$0xff]
      %v277 = vld [vmem:[%s166 + $0x130] sm:$0xff]
      %v278 = vld [vmem:[%s166 + $0x138] sm:$0xff]
      %v279 = vld [vmem:[%s166 + $0x140] sm:$0xff]
      %v280 = vld [vmem:[%s166 + $0x148] sm:$0xff]
      %v281 = vld [vmem:[%s166 + $0x150] sm:$0xff]
      %v282 = vld [vmem:[%s166 + $0x158] sm:$0xff]
      %v283 = vld [vmem:[%s166 + $0x160] sm:$0xff]
      %v284 = vld [vmem:[%s166 + $0x168] sm:$0xff]
      %v285 = vld [vmem:[%s166 + $0x170] sm:$0xff]
      %v286 = vld [vmem:[%s166 + $0x178] sm:$0xff]
      %v287 = vld [vmem:[%s166 + $0x180] sm:$0xff]
      %v288 = vld [vmem:[%s166 + $0x188] sm:$0xff]
      %v289 = vld [vmem:[%s166 + $0x190] sm:$0xff]
      %v290 = vld [vmem:[%s166 + $0x198] sm:$0xff]
      %v291 = vld [vmem:[%s166 + $0x1a0] sm:$0xff]
      %v292 = vld [vmem:[%s166 + $0x1a8] sm:$0xff]
      %v293 = vld [vmem:[%s166 + $0x1b0] sm:$0xff]
      %v294 = vld [vmem:[%s166 + $0x1b8] sm:$0xff]
      %v295 = vld [vmem:[%s166 + $0x1c0] sm:$0xff]
      %v296 = vld [vmem:[%s166 + $0x1c8] sm:$0xff]
      %v297 = vld [vmem:[%s166 + $0x1d0] sm:$0xff]
      %v298 = vld [vmem:[%s166 + $0x1d8] sm:$0xff]
      %v299 = vld [vmem:[%s166 + $0x1e0] sm:$0xff]
      %v300 = vld [vmem:[%s166 + $0x1e8] sm:$0xff]
      %v301 = vld [vmem:[%s166 + $0x1f0] sm:$0xff]
      %v302 = vld [vmem:[%s166 + $0x1f8] sm:$0xff]
      %vm303 = vcmask 64512
      %304 = vst.msk [vmem:[#allocation2] sm:$0xff] %vm303, %v239
      %305 = vst.msk [vmem:[#allocation2 + $0x8] sm:$0xff] %vm303, %v240
      %306 = vst.msk [vmem:[#allocation2 + $0x10] sm:$0xff] %vm303, %v241
      %307 = vst.msk [vmem:[#allocation2 + $0x18] sm:$0xff] %vm303, %v242
      %308 = vst.msk [vmem:[#allocation2 + $0x20] sm:$0xff] %vm303, %v243
      %309 = vst.msk [vmem:[#allocation2 + $0x28] sm:$0xff] %vm303, %v244
      %310 = vst.msk [vmem:[#allocation2 + $0x30] sm:$0xff] %vm303, %v245
      %311 = vst.msk [vmem:[#allocation2 + $0x38] sm:$0xff] %vm303, %v246
      %312 = vst.msk [vmem:[#allocation2 + $0x40] sm:$0xff] %vm303, %v247
      %313 = vst.msk [vmem:[#allocation2 + $0x48] sm:$0xff] %vm303, %v248
      %314 = vst.msk [vmem:[#allocation2 + $0x50] sm:$0xff] %vm303, %v249
      %315 = vst.msk [vmem:[#allocation2 + $0x58] sm:$0xff] %vm303, %v250
      %316 = vst.msk [vmem:[#allocation2 + $0x60] sm:$0xff] %vm303, %v251
      %317 = vst.msk [vmem:[#allocation2 + $0x68] sm:$0xff] %vm303, %v252
      %318 = vst.msk [vmem:[#allocation2 + $0x70] sm:$0xff] %vm303, %v253
      %319 = vst.msk [vmem:[#allocation2 + $0x78] sm:$0xff] %vm303, %v254
      %320 = vst.msk [vmem:[#allocation2 + $0x80] sm:$0xff] %vm303, %v255
      %321 = vst.msk [vmem:[#allocation2 + $0x88] sm:$0xff] %vm303, %v256
      %322 = vst.msk [vmem:[#allocation2 + $0x90] sm:$0xff] %vm303, %v257
      %323 = vst.msk [vmem:[#allocation2 + $0x98] sm:$0xff] %vm303, %v258
      %324 = vst.msk [vmem:[#allocation2 + $0xa0] sm:$0xff] %vm303, %v259
      %325 = vst.msk [vmem:[#allocation2 + $0xa8] sm:$0xff] %vm303, %v260
      %326 = vst.msk [vmem:[#allocation2 + $0xb0] sm:$0xff] %vm303, %v261
      %327 = vst.msk [vmem:[#allocation2 + $0xb8] sm:$0xff] %vm303, %v262
      %328 = vst.msk [vmem:[#allocation2 + $0xc0] sm:$0xff] %vm303, %v263
      %329 = vst.msk [vmem:[#allocation2 + $0xc8] sm:$0xff] %vm303, %v264
      %330 = vst.msk [vmem:[#allocation2 + $0xd0] sm:$0xff] %vm303, %v265
      %331 = vst.msk [vmem:[#allocation2 + $0xd8] sm:$0xff] %vm303, %v266
      %332 = vst.msk [vmem:[#allocation2 + $0xe0] sm:$0xff] %vm303, %v267
      %333 = vst.msk [vmem:[#allocation2 + $0xe8] sm:$0xff] %vm303, %v268
      %334 = vst.msk [vmem:[#allocation2 + $0xf0] sm:$0xff] %vm303, %v269
      %335 = vst.msk [vmem:[#allocation2 + $0xf8] sm:$0xff] %vm303, %v270
      %336 = vst.msk [vmem:[#allocation2 + $0x100] sm:$0xff] %vm303, %v271
      %337 = vst.msk [vmem:[#allocation2 + $0x108] sm:$0xff] %vm303, %v272
      %338 = vst.msk [vmem:[#allocation2 + $0x110] sm:$0xff] %vm303, %v273
      %339 = vst.msk [vmem:[#allocation2 + $0x118] sm:$0xff] %vm303, %v274
      %340 = vst.msk [vmem:[#allocation2 + $0x120] sm:$0xff] %vm303, %v275
      %341 = vst.msk [vmem:[#allocation2 + $0x128] sm:$0xff] %vm303, %v276
      %342 = vst.msk [vmem:[#allocation2 + $0x130] sm:$0xff] %vm303, %v277
      %343 = vst.msk [vmem:[#allocation2 + $0x138] sm:$0xff] %vm303, %v278
      %344 = vst.msk [vmem:[#allocation2 + $0x140] sm:$0xff] %vm303, %v279
      %345 = vst.msk [vmem:[#allocation2 + $0x148] sm:$0xff] %vm303, %v280
      %346 = vst.msk [vmem:[#allocation2 + $0x150] sm:$0xff] %vm303, %v281
      %347 = vst.msk [vmem:[#allocation2 + $0x158] sm:$0xff] %vm303, %v282
      %348 = vst.msk [vmem:[#allocation2 + $0x160] sm:$0xff] %vm303, %v283
      %349 = vst.msk [vmem:[#allocation2 + $0x168] sm:$0xff] %vm303, %v284
      %350 = vst.msk [vmem:[#allocation2 + $0x170] sm:$0xff] %vm303, %v285
      %351 = vst.msk [vmem:[#allocation2 + $0x178] sm:$0xff] %vm303, %v286
      %352 = vst.msk [vmem:[#allocation2 + $0x180] sm:$0xff] %vm303, %v287
      %353 = vst.msk [vmem:[#allocation2 + $0x188] sm:$0xff] %vm303, %v288
      %354 = vst.msk [vmem:[#allocation2 + $0x190] sm:$0xff] %vm303, %v289
      %355 = vst.msk [vmem:[#allocation2 + $0x198] sm:$0xff] %vm303, %v290
      %356 = vst.msk [vmem:[#allocation2 + $0x1a0] sm:$0xff] %vm303, %v291
      %357 = vst.msk [vmem:[#allocation2 + $0x1a8] sm:$0xff] %vm303, %v292
      %358 = vst.msk [vmem:[#allocation2 + $0x1b0] sm:$0xff] %vm303, %v293
      %359 = vst.msk [vmem:[#allocation2 + $0x1b8] sm:$0xff] %vm303, %v294
      %360 = vst.msk [vmem:[#allocation2 + $0x1c0] sm:$0xff] %vm303, %v295
      %361 = vst.msk [vmem:[#allocation2 + $0x1c8] sm:$0xff] %vm303, %v296
      %362 = vst.msk [vmem:[#allocation2 + $0x1d0] sm:$0xff] %vm303, %v297
      %363 = vst.msk [vmem:[#allocation2 + $0x1d8] sm:$0xff] %vm303, %v298
      %364 = vst.msk [vmem:[#allocation2 + $0x1e0] sm:$0xff] %vm303, %v299
      %365 = vst.msk [vmem:[#allocation2 + $0x1e8] sm:$0xff] %vm303, %v300
      %366 = vst.msk [vmem:[#allocation2 + $0x1f0] sm:$0xff] %vm303, %v301
      %367 = vst.msk [vmem:[#allocation2 + $0x1f8] sm:$0xff] %vm303, %v302
      %v368 = vld [vmem:[#allocation2] sm:$0xff]
      %v369 = vld [vmem:[#allocation2 + $0x8] sm:$0xff]
      %v370 = vld [vmem:[#allocation2 + $0x10] sm:$0xff]
      %v371 = vld [vmem:[#allocation2 + $0x18] sm:$0xff]
      %v372 = vld [vmem:[#allocation2 + $0x20] sm:$0xff]
      %v373 = vld [vmem:[#allocation2 + $0x28] sm:$0xff]
      %v374 = vld [vmem:[#allocation2 + $0x30] sm:$0xff]
      %v375 = vld [vmem:[#allocation2 + $0x38] sm:$0xff]
      %v376 = vld [vmem:[#allocation2 + $0x40] sm:$0xff]
      %v377 = vld [vmem:[#allocation2 + $0x48] sm:$0xff]
      %v378 = vld [vmem:[#allocation2 + $0x50] sm:$0xff]
      %v379 = vld [vmem:[#allocation2 + $0x58] sm:$0xff]
      %v380 = vld [vmem:[#allocation2 + $0x60] sm:$0xff]
      %v381 = vld [vmem:[#allocation2 + $0x68] sm:$0xff]
      %v382 = vld [vmem:[#allocation2 + $0x70] sm:$0xff]
      %v383 = vld [vmem:[#allocation2 + $0x78] sm:$0xff]
      %v384 = vld [vmem:[#allocation2 + $0x80] sm:$0xff]
      %v385 = vld [vmem:[#allocation2 + $0x88] sm:$0xff]
      %v386 = vld [vmem:[#allocation2 + $0x90] sm:$0xff]
      %v387 = vld [vmem:[#allocation2 + $0x98] sm:$0xff]
      %v388 = vld [vmem:[#allocation2 + $0xa0] sm:$0xff]
      %v389 = vld [vmem:[#allocation2 + $0xa8] sm:$0xff]
      %v390 = vld [vmem:[#allocation2 + $0xb0] sm:$0xff]
      %v391 = vld [vmem:[#allocation2 + $0xb8] sm:$0xff]
      %v392 = vld [vmem:[#allocation2 + $0xc0] sm:$0xff]
      %v393 = vld [vmem:[#allocation2 + $0xc8] sm:$0xff]
      %v394 = vld [vmem:[#allocation2 + $0xd0] sm:$0xff]
      %v395 = vld [vmem:[#allocation2 + $0xd8] sm:$0xff]
      %v396 = vld [vmem:[#allocation2 + $0xe0] sm:$0xff]
      %v397 = vld [vmem:[#allocation2 + $0xe8] sm:$0xff]
      %v398 = vld [vmem:[#allocation2 + $0xf0] sm:$0xff]
      %v399 = vld [vmem:[#allocation2 + $0xf8] sm:$0xff]
      %v400 = vld [vmem:[#allocation2 + $0x100] sm:$0xff]
      %v401 = vld [vmem:[#allocation2 + $0x108] sm:$0xff]
      %v402 = vld [vmem:[#allocation2 + $0x110] sm:$0xff]
      %v403 = vld [vmem:[#allocation2 + $0x118] sm:$0xff]
      %v404 = vld [vmem:[#allocation2 + $0x120] sm:$0xff]
      %v405 = vld [vmem:[#allocation2 + $0x128] sm:$0xff]
      %v406 = vld [vmem:[#allocation2 + $0x130] sm:$0xff]
      %v407 = vld [vmem:[#allocation2 + $0x138] sm:$0xff]
      %v408 = vld [vmem:[#allocation2 + $0x140] sm:$0xff]
      %v409 = vld [vmem:[#allocation2 + $0x148] sm:$0xff]
      %v410 = vld [vmem:[#allocation2 + $0x150] sm:$0xff]
      %v411 = vld [vmem:[#allocation2 + $0x158] sm:$0xff]
      %v412 = vld [vmem:[#allocation2 + $0x160] sm:$0xff]
      %v413 = vld [vmem:[#allocation2 + $0x168] sm:$0xff]
      %v414 = vld [vmem:[#allocation2 + $0x170] sm:$0xff]
      %v415 = vld [vmem:[#allocation2 + $0x178] sm:$0xff]
      %v416 = vld [vmem:[#allocation2 + $0x180] sm:$0xff]
      %v417 = vld [vmem:[#allocation2 + $0x188] sm:$0xff]
      %v418 = vld [vmem:[#allocation2 + $0x190] sm:$0xff]
      %v419 = vld [vmem:[#allocation2 + $0x198] sm:$0xff]
      %v420 = vld [vmem:[#allocation2 + $0x1a0] sm:$0xff]
      %v421 = vld [vmem:[#allocation2 + $0x1a8] sm:$0xff]
      %v422 = vld [vmem:[#allocation2 + $0x1b0] sm:$0xff]
      %v423 = vld [vmem:[#allocation2 + $0x1b8] sm:$0xff]
      %v424 = vld [vmem:[#allocation2 + $0x1c0] sm:$0xff]
      %v425 = vld [vmem:[#allocation2 + $0x1c8] sm:$0xff]
      %v426 = vld [vmem:[#allocation2 + $0x1d0] sm:$0xff]
      %v427 = vld [vmem:[#allocation2 + $0x1d8] sm:$0xff]
      %v428 = vld [vmem:[#allocation2 + $0x1e0] sm:$0xff]
      %v429 = vld [vmem:[#allocation2 + $0x1e8] sm:$0xff]
      %v430 = vld [vmem:[#allocation2 + $0x1f0] sm:$0xff]
      %v431 = vld [vmem:[#allocation2 + $0x1f8] sm:$0xff]
      %v432 = vld [vmem:[%s2] sm:$0x7]
      %v433 = vpack.c.bf16 %v369, %v368
      %v434 = vpack.c.bf16 %v371, %v370
      %v435 = vpack.c.bf16 %v373, %v372
      %v436 = vpack.c.bf16 %v375, %v374
      %v437 = vpack.c.bf16 %v377, %v376
      %v438 = vpack.c.bf16 %v379, %v378
      %v439 = vpack.c.bf16 %v381, %v380
      %v440 = vpack.c.bf16 %v383, %v382
      %v441 = vpack.c.bf16 %v385, %v384
      %v442 = vpack.c.bf16 %v387, %v386
      %v443 = vpack.c.bf16 %v389, %v388
      %v444 = vpack.c.bf16 %v391, %v390
      %v445 = vpack.c.bf16 %v393, %v392
      %v446 = vpack.c.bf16 %v395, %v394
      %v447 = vpack.c.bf16 %v397, %v396
      %v448 = vpack.c.bf16 %v399, %v398
      %v449 = vpack.c.bf16 %v401, %v400
      %v450 = vpack.c.bf16 %v403, %v402
      %v451 = vpack.c.bf16 %v405, %v404
      %v452 = vpack.c.bf16 %v407, %v406
      %v453 = vpack.c.bf16 %v409, %v408
      %v454 = vpack.c.bf16 %v411, %v410
      %v455 = vpack.c.bf16 %v413, %v412
      %v456 = vpack.c.bf16 %v415, %v414
      %v457 = vpack.c.bf16 %v417, %v416
      %v458 = vpack.c.bf16 %v419, %v418
      %v459 = vpack.c.bf16 %v421, %v420
      %v460 = vpack.c.bf16 %v423, %v422
      %v461 = vpack.c.bf16 %v425, %v424
      %v462 = vpack.c.bf16 %v427, %v426
      %v463 = vpack.c.bf16 %v429, %v428
      %v464 = vpack.c.bf16 %v431, %v430
      %v465 = vld [vmem:[%s1] sm:$0xf]
      %v466 = vld [vmem:[%s1 + $0x4] sm:$0xf]
      %v467 = vld [vmem:[%s1 + $0x8] sm:$0xf]
      %v468 = vld [vmem:[%s1 + $0xc] sm:$0xf]
      %v469 = vld [vmem:[%s1 + $0x10] sm:$0xf]
      %v470 = vld [vmem:[%s1 + $0x14] sm:$0xf]
      %v471 = vld [vmem:[%s1 + $0x18] sm:$0xf]
      %v472 = vld [vmem:[%s1 + $0x1c] sm:$0xf]
      %v473 = vld [vmem:[%s1 + $0x20] sm:$0xf]
      %v474 = vld [vmem:[%s1 + $0x24] sm:$0xf]
      %v475 = vld [vmem:[%s1 + $0x28] sm:$0xf]
      %v476 = vld [vmem:[%s1 + $0x2c] sm:$0xf]
      %v477 = vld [vmem:[%s1 + $0x30] sm:$0xf]
      %v478 = vld [vmem:[%s1 + $0x34] sm:$0xf]
      %v479 = vld [vmem:[%s1 + $0x38] sm:$0xf]
      %v480 = vld [vmem:[%s1 + $0x3c] sm:$0xf]
      %v481 = vlaneseq
      %v482 = vshrl.u32 %v481, 7
      %v483 = vsub.s32 0, %v482
      %v484 = vrot.slane %v432, %v483
      %v501 = vunpack.c.l.b16 %v465
      %v502 = vunpack.c.l.b16 %v466
      %v503 = vunpack.c.l.b16 %v467
      %v504 = vunpack.c.l.b16 %v468
      %v505 = vunpack.c.l.b16 %v469
      %v506 = vunpack.c.l.b16 %v470
      %v507 = vunpack.c.l.b16 %v471
      %v508 = vunpack.c.l.b16 %v472
      %v509 = vunpack.c.l.b16 %v473
      %v510 = vunpack.c.l.b16 %v474
      %v511 = vunpack.c.l.b16 %v475
      %v512 = vunpack.c.l.b16 %v476
      %v513 = vunpack.c.l.b16 %v477
      %v514 = vunpack.c.l.b16 %v478
      %v515 = vunpack.c.l.b16 %v479
      %v516 = vunpack.c.l.b16 %v480
      %v517 = vpack.c.b16 %v502, %v501
      %v518 = vpack.c.b16 %v504, %v503
      %v519 = vpack.c.b16 %v506, %v505
      %v520 = vpack.c.b16 %v508, %v507
      %v521 = vpack.c.b16 %v510, %v509
      %v522 = vpack.c.b16 %v512, %v511
      %v523 = vpack.c.b16 %v514, %v513
      %v524 = vpack.c.b16 %v516, %v515
      %533 = vmatprep.subr.bf16.mxu0 0
      %534 = vmatpush1.bf16.msra.mxu0 %v517
      %535 = vmatprep.subr.bf16.mxu0 0
      %536 = vmatpush1.bf16.msra.mxu0 %v518
      %537 = vmatprep.subr.bf16.mxu0 0
      %538 = vmatpush1.bf16.msra.mxu0 %v519
      %539 = vmatprep.subr.bf16.mxu0 0
      %540 = vmatpush1.bf16.msra.mxu0 %v520
      %541 = vmatprep.subr.bf16.mxu0 0
      %542 = vmatpush1.bf16.msra.mxu0 %v521
      %543 = vmatprep.subr.bf16.mxu0 0
      %544 = vmatpush1.bf16.msra.mxu0 %v522
      %545 = vmatprep.subr.bf16.mxu0 0
      %546 = vmatpush1.bf16.msra.mxu0 %v523
      %547 = vmatprep.subr.bf16.mxu0 0
      %548 = vmatpush1.bf16.msra.mxu0 %v524
      %549 = vmatprep.subr.bf16.mxu0 0
      %550 = vmatpush1.bf16.msra.mxu0 0
      %551 = vmatprep.subr.bf16.mxu0 0
      %552 = vmatpush1.bf16.msra.mxu0 0
      %553 = vmatprep.subr.bf16.mxu0 0
      %554 = vmatpush1.bf16.msra.mxu0 0
      %555 = vmatprep.subr.bf16.mxu0 0
      %556 = vmatpush1.bf16.msra.mxu0 0
      %557 = vmatprep.subr.bf16.mxu0 0
      %558 = vmatpush1.bf16.msra.mxu0 0
      %559 = vmatprep.subr.bf16.mxu0 0
      %560 = vmatpush1.bf16.msra.mxu0 0
      %561 = vmatprep.subr.bf16.mxu0 0
      %562 = vmatpush1.bf16.msra.mxu0 0
      %563 = vmatprep.subr.bf16.mxu0 0
      %564 = vmatpush1.bf16.msra.mxu0 0
      %565 = vmatprep.mubr.bf16.mxu0 0
      %566 = vmatmul.mubr.bf16.gmra.mrb[0].mxu0 %v433
      %v567 = vpop.f32.mrb[0].mxu0
      %v568 = vadd.f32 %v484, %v567
      %v569 = vpop.f32.mrb[0].mxu0
      %v570 = vpop.f32.mrb[0].mxu0
      %v571 = vadd.f32 %v484, %v570
      %v572 = vpop.f32.mrb[0].mxu0
      %573 = vmatprep.mubr.bf16.mxu0 0
      %574 = vmatmul.mubr.bf16.gmra.mrb[0].mxu0 %v434
      %v575 = vpop.f32.mrb[0].mxu0
      %v576 = vadd.f32 %v484, %v575
      %v577 = vpop.f32.mrb[0].mxu0
      %v578 = vpop.f32.mrb[0].mxu0
      %v579 = vadd.f32 %v484, %v578
      %v580 = vpop.f32.mrb[0].mxu0
      %581 = vmatprep.mubr.bf16.mxu0 0
      %582 = vmatmul.mubr.bf16.gmra.mrb[0].mxu0 %v435
      %v583 = vpop.f32.mrb[0].mxu0
      %v584 = vadd.f32 %v484, %v583
      %v585 = vpop.f32.mrb[0].mxu0
      %v586 = vpop.f32.mrb[0].mxu0
      %v587 = vadd.f32 %v484, %v586
      %v588 = vpop.f32.mrb[0].mxu0
      %589 = vmatprep.mubr.bf16.mxu0 0
      %590 = vmatmul.mubr.bf16.gmra.mrb[0].mxu0 %v436
      %v591 = vpop.f32.mrb[0].mxu0
      %v592 = vadd.f32 %v484, %v591
      %v593 = vpop.f32.mrb[0].mxu0
      %v594 = vpop.f32.mrb[0].mxu0
      %v595 = vadd.f32 %v484, %v594
      %v596 = vpop.f32.mrb[0].mxu0
      %597 = vmatprep.mubr.bf16.mxu0 0
      %598 = vmatmul.mubr.bf16.gmra.mrb[0].mxu0 %v437
      %v599 = vpop.f32.mrb[0].mxu0
      %v600 = vadd.f32 %v484, %v599
      %v601 = vpop.f32.mrb[0].mxu0
      %v602 = vpop.f32.mrb[0].mxu0
      %v603 = vadd.f32 %v484, %v602
      %v604 = vpop.f32.mrb[0].mxu0
      %605 = vmatprep.mubr.bf16.mxu0 0
      %606 = vmatmul.mubr.bf16.gmra.mrb[0].mxu0 %v438
      %v607 = vpop.f32.mrb[0].mxu0
      %v608 = vadd.f32 %v484, %v607
      %v609 = vpop.f32.mrb[0].mxu0
      %v610 = vpop.f32.mrb[0].mxu0
      %v611 = vadd.f32 %v484, %v610
      %v612 = vpop.f32.mrb[0].mxu0
      %613 = vmatprep.mubr.bf16.mxu0 0
      %614 = vmatmul.mubr.bf16.gmra.mrb[0].mxu0 %v439
      %v615 = vpop.f32.mrb[0].mxu0
      %v616 = vadd.f32 %v484, %v615
      %v617 = vpop.f32.mrb[0].mxu0
      %v618 = vpop.f32.mrb[0].mxu0
      %v619 = vadd.f32 %v484, %v618
      %v620 = vpop.f32.mrb[0].mxu0
      %621 = vmatprep.mubr.bf16.mxu0 0
      %622 = vmatmul.mubr.bf16.gmra.mrb[0].mxu0 %v440
      %v623 = vpop.f32.mrb[0].mxu0
      %v624 = vadd.f32 %v484, %v623
      %v625 = vpop.f32.mrb[0].mxu0
      %v626 = vpop.f32.mrb[0].mxu0
      %v627 = vadd.f32 %v484, %v626
      %v628 = vpop.f32.mrb[0].mxu0
      %629 = vmatprep.mubr.bf16.mxu0 0
      %630 = vmatmul.mubr.bf16.gmra.mrb[0].mxu0 %v441
      %v631 = vpop.f32.mrb[0].mxu0
      %v632 = vadd.f32 %v484, %v631
      %v633 = vpop.f32.mrb[0].mxu0
      %v634 = vpop.f32.mrb[0].mxu0
      %v635 = vadd.f32 %v484, %v634
      %v636 = vpop.f32.mrb[0].mxu0
      %637 = vmatprep.mubr.bf16.mxu0 0
      %638 = vmatmul.mubr.bf16.gmra.mrb[0].mxu0 %v442
      %v639 = vpop.f32.mrb[0].mxu0
      %v640 = vadd.f32 %v484, %v639
      %v641 = vpop.f32.mrb[0].mxu0
      %v642 = vpop.f32.mrb[0].mxu0
      %v643 = vadd.f32 %v484, %v642
      %v644 = vpop.f32.mrb[0].mxu0
      %645 = vmatprep.mubr.bf16.mxu0 0
      %646 = vmatmul.mubr.bf16.gmra.mrb[0].mxu0 %v443
      %v647 = vpop.f32.mrb[0].mxu0
      %v648 = vadd.f32 %v484, %v647
      %v649 = vpop.f32.mrb[0].mxu0
      %v650 = vpop.f32.mrb[0].mxu0
      %v651 = vadd.f32 %v484, %v650
      %v652 = vpop.f32.mrb[0].mxu0
      %653 = vmatprep.mubr.bf16.mxu0 0
      %654 = vmatmul.mubr.bf16.gmra.mrb[0].mxu0 %v444
      %v655 = vpop.f32.mrb[0].mxu0
      %v656 = vadd.f32 %v484, %v655
      %v657 = vpop.f32.mrb[0].mxu0
      %v658 = vpop.f32.mrb[0].mxu0
      %v659 = vadd.f32 %v484, %v658
      %v660 = vpop.f32.mrb[0].mxu0
      %661 = vmatprep.mubr.bf16.mxu0 0
      %662 = vmatmul.mubr.bf16.gmra.mrb[0].mxu0 %v445
      %v663 = vpop.f32.mrb[0].mxu0
      %v664 = vadd.f32 %v484, %v663
      %v665 = vpop.f32.mrb[0].mxu0
      %v666 = vpop.f32.mrb[0].mxu0
      %v667 = vadd.f32 %v484, %v666
      %v668 = vpop.f32.mrb[0].mxu0
      %669 = vmatprep.mubr.bf16.mxu0 0
      %670 = vmatmul.mubr.bf16.gmra.mrb[0].mxu0 %v446
      %v671 = vpop.f32.mrb[0].mxu0
      %v672 = vadd.f32 %v484, %v671
      %v673 = vpop.f32.mrb[0].mxu0
      %v674 = vpop.f32.mrb[0].mxu0
      %v675 = vadd.f32 %v484, %v674
      %v676 = vpop.f32.mrb[0].mxu0
      %677 = vmatprep.mubr.bf16.mxu0 0
      %678 = vmatmul.mubr.bf16.gmra.mrb[0].mxu0 %v447
      %v679 = vpop.f32.mrb[0].mxu0
      %v680 = vadd.f32 %v484, %v679
      %v681 = vpop.f32.mrb[0].mxu0
      %v682 = vpop.f32.mrb[0].mxu0
      %v683 = vadd.f32 %v484, %v682
      %v684 = vpop.f32.mrb[0].mxu0
      %685 = vmatprep.mubr.bf16.mxu0 0
      %686 = vmatmul.mubr.bf16.gmra.mrb[0].mxu0 %v448
      %v687 = vpop.f32.mrb[0].mxu0
      %v688 = vadd.f32 %v484, %v687
      %v689 = vpop.f32.mrb[0].mxu0
      %v690 = vpop.f32.mrb[0].mxu0
      %v691 = vadd.f32 %v484, %v690
      %v692 = vpop.f32.mrb[0].mxu0
      %693 = vmatprep.mubr.bf16.mxu0 0
      %694 = vmatmul.mubr.bf16.gmra.mrb[0].mxu0 %v449
      %v695 = vpop.f32.mrb[0].mxu0
      %v696 = vadd.f32 %v484, %v695
      %v697 = vpop.f32.mrb[0].mxu0
      %v698 = vpop.f32.mrb[0].mxu0
      %v699 = vadd.f32 %v484, %v698
      %v700 = vpop.f32.mrb[0].mxu0
      %701 = vmatprep.mubr.bf16.mxu0 0
      %702 = vmatmul.mubr.bf16.gmra.mrb[0].mxu0 %v450
      %v703 = vpop.f32.mrb[0].mxu0
      %v704 = vadd.f32 %v484, %v703
      %v705 = vpop.f32.mrb[0].mxu0
      %v706 = vpop.f32.mrb[0].mxu0
      %v707 = vadd.f32 %v484, %v706
      %v708 = vpop.f32.mrb[0].mxu0
      %709 = vmatprep.mubr.bf16.mxu0 0
      %710 = vmatmul.mubr.bf16.gmra.mrb[0].mxu0 %v451
      %v711 = vpop.f32.mrb[0].mxu0
      %v712 = vadd.f32 %v484, %v711
      %v713 = vpop.f32.mrb[0].mxu0
      %v714 = vpop.f32.mrb[0].mxu0
      %v715 = vadd.f32 %v484, %v714
      %v716 = vpop.f32.mrb[0].mxu0
      %717 = vmatprep.mubr.bf16.mxu0 0
      %718 = vmatmul.mubr.bf16.gmra.mrb[0].mxu0 %v452
      %v719 = vpop.f32.mrb[0].mxu0
      %v720 = vadd.f32 %v484, %v719
      %v721 = vpop.f32.mrb[0].mxu0
      %v722 = vpop.f32.mrb[0].mxu0
      %v723 = vadd.f32 %v484, %v722
      %v724 = vpop.f32.mrb[0].mxu0
      %725 = vmatprep.mubr.bf16.mxu0 0
      %726 = vmatmul.mubr.bf16.gmra.mrb[0].mxu0 %v453
      %v727 = vpop.f32.mrb[0].mxu0
      %v728 = vadd.f32 %v484, %v727
      %v729 = vpop.f32.mrb[0].mxu0
      %v730 = vpop.f32.mrb[0].mxu0
      %v731 = vadd.f32 %v484, %v730
      %v732 = vpop.f32.mrb[0].mxu0
      %733 = vmatprep.mubr.bf16.mxu0 0
      %734 = vmatmul.mubr.bf16.gmra.mrb[0].mxu0 %v454
      %v735 = vpop.f32.mrb[0].mxu0
      %v736 = vadd.f32 %v484, %v735
      %v737 = vpop.f32.mrb[0].mxu0
      %v738 = vpop.f32.mrb[0].mxu0
      %v739 = vadd.f32 %v484, %v738
      %v740 = vpop.f32.mrb[0].mxu0
      %741 = vmatprep.mubr.bf16.mxu0 0
      %742 = vmatmul.mubr.bf16.gmra.mrb[0].mxu0 %v455
      %v743 = vpop.f32.mrb[0].mxu0
      %v744 = vadd.f32 %v484, %v743
      %v745 = vpop.f32.mrb[0].mxu0
      %v746 = vpop.f32.mrb[0].mxu0
      %v747 = vadd.f32 %v484, %v746
      %v748 = vpop.f32.mrb[0].mxu0
      %749 = vmatprep.mubr.bf16.mxu0 0
      %750 = vmatmul.mubr.bf16.gmra.mrb[0].mxu0 %v456
      %v751 = vpop.f32.mrb[0].mxu0
      %v752 = vadd.f32 %v484, %v751
      %v753 = vpop.f32.mrb[0].mxu0
      %v754 = vpop.f32.mrb[0].mxu0
      %v755 = vadd.f32 %v484, %v754
      %v756 = vpop.f32.mrb[0].mxu0
      %757 = vmatprep.mubr.bf16.mxu0 0
      %758 = vmatmul.mubr.bf16.gmra.mrb[0].mxu0 %v457
      %v759 = vpop.f32.mrb[0].mxu0
      %v760 = vadd.f32 %v484, %v759
      %v761 = vpop.f32.mrb[0].mxu0
      %v762 = vpop.f32.mrb[0].mxu0
      %v763 = vadd.f32 %v484, %v762
      %v764 = vpop.f32.mrb[0].mxu0
      %765 = vmatprep.mubr.bf16.mxu0 0
      %766 = vmatmul.mubr.bf16.gmra.mrb[0].mxu0 %v458
      %v767 = vpop.f32.mrb[0].mxu0
      %v768 = vadd.f32 %v484, %v767
      %v769 = vpop.f32.mrb[0].mxu0
      %v770 = vpop.f32.mrb[0].mxu0
      %v771 = vadd.f32 %v484, %v770
      %v772 = vpop.f32.mrb[0].mxu0
      %773 = vmatprep.mubr.bf16.mxu0 0
      %774 = vmatmul.mubr.bf16.gmra.mrb[0].mxu0 %v459
      %v775 = vpop.f32.mrb[0].mxu0
      %v776 = vadd.f32 %v484, %v775
      %v777 = vpop.f32.mrb[0].mxu0
      %v778 = vpop.f32.mrb[0].mxu0
      %v779 = vadd.f32 %v484, %v778
      %v780 = vpop.f32.mrb[0].mxu0
      %781 = vmatprep.mubr.bf16.mxu0 0
      %782 = vmatmul.mubr.bf16.gmra.mrb[0].mxu0 %v460
      %v783 = vpop.f32.mrb[0].mxu0
      %v784 = vadd.f32 %v484, %v783
      %v785 = vpop.f32.mrb[0].mxu0
      %v786 = vpop.f32.mrb[0].mxu0
      %v787 = vadd.f32 %v484, %v786
      %v788 = vpop.f32.mrb[0].mxu0
      %789 = vmatprep.mubr.bf16.mxu0 0
      %790 = vmatmul.mubr.bf16.gmra.mrb[0].mxu0 %v461
      %v791 = vpop.f32.mrb[0].mxu0
      %v792 = vadd.f32 %v484, %v791
      %v793 = vpop.f32.mrb[0].mxu0
      %v794 = vpop.f32.mrb[0].mxu0
      %v795 = vadd.f32 %v484, %v794
      %v796 = vpop.f32.mrb[0].mxu0
      %797 = vmatprep.mubr.bf16.mxu0 0
      %798 = vmatmul.mubr.bf16.gmra.mrb[0].mxu0 %v462
      %v799 = vpop.f32.mrb[0].mxu0
      %v800 = vadd.f32 %v484, %v799
      %v801 = vpop.f32.mrb[0].mxu0
      %v802 = vpop.f32.mrb[0].mxu0
      %v803 = vadd.f32 %v484, %v802
      %v804 = vpop.f32.mrb[0].mxu0
      %805 = vmatprep.mubr.bf16.mxu0 0
      %806 = vmatmul.mubr.bf16.gmra.mrb[0].mxu0 %v463
      %v807 = vpop.f32.mrb[0].mxu0
      %v808 = vadd.f32 %v484, %v807
      %v809 = vpop.f32.mrb[0].mxu0
      %v810 = vpop.f32.mrb[0].mxu0
      %v811 = vadd.f32 %v484, %v810
      %v812 = vpop.f32.mrb[0].mxu0
      %813 = vmatprep.mubr.bf16.mxu0 0
      %814 = vmatmul.mubr.bf16.gmra.mrb[0].mxu0 %v464
      %v815 = vpop.f32.mrb[0].mxu0
      %v816 = vadd.f32 %v484, %v815
      %v817 = vpop.f32.mrb[0].mxu0
      %v818 = vpop.f32.mrb[0].mxu0
      %v819 = vadd.f32 %v484, %v818
      %v820 = vpop.f32.mrb[0].mxu0
      %821 = vdwg.mxu0
      %v822 = vmax.f32 %v568, 0.0
      %v823 = vmax.f32 %v571, 0.0
      %v824 = vmax.f32 %v576, 0.0
      %v825 = vmax.f32 %v579, 0.0
      %v826 = vmax.f32 %v584, 0.0
      %v827 = vmax.f32 %v587, 0.0
      %v828 = vmax.f32 %v592, 0.0
      %v829 = vmax.f32 %v595, 0.0
      %v830 = vmax.f32 %v600, 0.0
      %v831 = vmax.f32 %v603, 0.0
      %v832 = vmax.f32 %v608, 0.0
      %v833 = vmax.f32 %v611, 0.0
      %v834 = vmax.f32 %v616, 0.0
      %v835 = vmax.f32 %v619, 0.0
      %v836 = vmax.f32 %v624, 0.0
      %v837 = vmax.f32 %v627, 0.0
      %v838 = vmax.f32 %v632, 0.0
      %v839 = vmax.f32 %v635, 0.0
      %v840 = vmax.f32 %v640, 0.0
      %v841 = vmax.f32 %v643, 0.0
      %v842 = vmax.f32 %v648, 0.0
      %v843 = vmax.f32 %v651, 0.0
      %v844 = vmax.f32 %v656, 0.0
      %v845 = vmax.f32 %v659, 0.0
      %v846 = vmax.f32 %v664, 0.0
      %v847 = vmax.f32 %v667, 0.0
      %v848 = vmax.f32 %v672, 0.0
      %v849 = vmax.f32 %v675, 0.0
      %v850 = vmax.f32 %v680, 0.0
      %v851 = vmax.f32 %v683, 0.0
      %v852 = vmax.f32 %v688, 0.0
      %v853 = vmax.f32 %v691, 0.0
      %v854 = vmax.f32 %v696, 0.0
      %v855 = vmax.f32 %v699, 0.0
      %v856 = vmax.f32 %v704, 0.0
      %v857 = vmax.f32 %v707, 0.0
      %v858 = vmax.f32 %v712, 0.0
      %v859 = vmax.f32 %v715, 0.0
      %v860 = vmax.f32 %v720, 0.0
      %v861 = vmax.f32 %v723, 0.0
      %v862 = vmax.f32 %v728, 0.0
      %v863 = vmax.f32 %v731, 0.0
      %v864 = vmax.f32 %v736, 0.0
      %v865 = vmax.f32 %v739, 0.0
      %v866 = vmax.f32 %v744, 0.0
      %v867 = vmax.f32 %v747, 0.0
      %v868 = vmax.f32 %v752, 0.0
      %v869 = vmax.f32 %v755, 0.0
      %v870 = vmax.f32 %v760, 0.0
      %v871 = vmax.f32 %v763, 0.0
      %v872 = vmax.f32 %v768, 0.0
      %v873 = vmax.f32 %v771, 0.0
      %v874 = vmax.f32 %v776, 0.0
      %v875 = vmax.f32 %v779, 0.0
      %v876 = vmax.f32 %v784, 0.0
      %v877 = vmax.f32 %v787, 0.0
      %v878 = vmax.f32 %v792, 0.0
      %v879 = vmax.f32 %v795, 0.0
      %v880 = vmax.f32 %v800, 0.0
      %v881 = vmax.f32 %v803, 0.0
      %v882 = vmax.f32 %v808, 0.0
      %v883 = vmax.f32 %v811, 0.0
      %v884 = vmax.f32 %v816, 0.0
      %v885 = vmax.f32 %v819, 0.0
      %v886 = vpack.c.bf16 %v823, %v822
      %v887 = vpack.c.bf16 %v825, %v824
      %v888 = vpack.c.bf16 %v827, %v826
      %v889 = vpack.c.bf16 %v829, %v828
      %v890 = vpack.c.bf16 %v831, %v830
      %v891 = vpack.c.bf16 %v833, %v832
      %v892 = vpack.c.bf16 %v835, %v834
      %v893 = vpack.c.bf16 %v837, %v836
      %v894 = vpack.c.bf16 %v839, %v838
      %v895 = vpack.c.bf16 %v841, %v840
      %v896 = vpack.c.bf16 %v843, %v842
      %v897 = vpack.c.bf16 %v845, %v844
      %v898 = vpack.c.bf16 %v847, %v846
      %v899 = vpack.c.bf16 %v849, %v848
      %v900 = vpack.c.bf16 %v851, %v850
      %v901 = vpack.c.bf16 %v853, %v852
      %v902 = vpack.c.bf16 %v855, %v854
      %v903 = vpack.c.bf16 %v857, %v856
      %v904 = vpack.c.bf16 %v859, %v858
      %v905 = vpack.c.bf16 %v861, %v860
      %v906 = vpack.c.bf16 %v863, %v862
      %v907 = vpack.c.bf16 %v865, %v864
      %v908 = vpack.c.bf16 %v867, %v866
      %v909 = vpack.c.bf16 %v869, %v868
      %v910 = vpack.c.bf16 %v871, %v870
      %v911 = vpack.c.bf16 %v873, %v872
      %v912 = vpack.c.bf16 %v875, %v874
      %v913 = vpack.c.bf16 %v877, %v876
      %v914 = vpack.c.bf16 %v879, %v878
      %v915 = vpack.c.bf16 %v881, %v880
      %v916 = vpack.c.bf16 %v883, %v882
      %v917 = vpack.c.bf16 %v885, %v884
      %s918 = scalar_lea.vmem %s1, 64
      %v919 = vld [vmem:[%s918] sm:$0xf]
      %v920 = vld [vmem:[%s918 + $0x4] sm:$0xf]
      %v921 = vld [vmem:[%s918 + $0x8] sm:$0xf]
      %v922 = vld [vmem:[%s918 + $0xc] sm:$0xf]
      %v923 = vld [vmem:[%s918 + $0x10] sm:$0xf]
      %v924 = vld [vmem:[%s918 + $0x14] sm:$0xf]
      %v925 = vld [vmem:[%s918 + $0x18] sm:$0xf]
      %v926 = vld [vmem:[%s918 + $0x1c] sm:$0xf]
      %v927 = vld [vmem:[%s918 + $0x20] sm:$0xf]
      %v928 = vld [vmem:[%s918 + $0x24] sm:$0xf]
      %v929 = vld [vmem:[%s918 + $0x28] sm:$0xf]
      %v930 = vld [vmem:[%s918 + $0x2c] sm:$0xf]
      %v931 = vld [vmem:[%s918 + $0x30] sm:$0xf]
      %v932 = vld [vmem:[%s918 + $0x34] sm:$0xf]
      %v933 = vld [vmem:[%s918 + $0x38] sm:$0xf]
      %v934 = vld [vmem:[%s918 + $0x3c] sm:$0xf]
      %v935 = vlaneseq
      %v936 = vshrl.u32 %v935, 7
      %v937 = vsub.s32 1, %v936
      %v938 = vrot.slane %v432, %v937
      %v955 = vunpack.c.l.b16 %v919
      %v956 = vunpack.c.l.b16 %v920
      %v957 = vunpack.c.l.b16 %v921
      %v958 = vunpack.c.l.b16 %v922
      %v959 = vunpack.c.l.b16 %v923
      %v960 = vunpack.c.l.b16 %v924
      %v961 = vunpack.c.l.b16 %v925
      %v962 = vunpack.c.l.b16 %v926
      %v963 = vunpack.c.l.b16 %v927
      %v964 = vunpack.c.l.b16 %v928
      %v965 = vunpack.c.l.b16 %v929
      %v966 = vunpack.c.l.b16 %v930
      %v967 = vunpack.c.l.b16 %v931
      %v968 = vunpack.c.l.b16 %v932
      %v969 = vunpack.c.l.b16 %v933
      %v970 = vunpack.c.l.b16 %v934
      %v971 = vpack.c.b16 %v956, %v955
      %v972 = vpack.c.b16 %v958, %v957
      %v973 = vpack.c.b16 %v960, %v959
      %v974 = vpack.c.b16 %v962, %v961
      %v975 = vpack.c.b16 %v964, %v963
      %v976 = vpack.c.b16 %v966, %v965
      %v977 = vpack.c.b16 %v968, %v967
      %v978 = vpack.c.b16 %v970, %v969
      %987 = vmatprep.subr.bf16.mxu0 0
      %988 = vmatpush1.bf16.msra.mxu0 %v971
      %989 = vmatprep.subr.bf16.mxu0 0
      %990 = vmatpush1.bf16.msra.mxu0 %v972
      %991 = vmatprep.subr.bf16.mxu0 0
      %992 = vmatpush1.bf16.msra.mxu0 %v973
      %993 = vmatprep.subr.bf16.mxu0 0
      %994 = vmatpush1.bf16.msra.mxu0 %v974
      %995 = vmatprep.subr.bf16.mxu0 0
      %996 = vmatpush1.bf16.msra.mxu0 %v975
      %997 = vmatprep.subr.bf16.mxu0 0
      %998 = vmatpush1.bf16.msra.mxu0 %v976
      %999 = vmatprep.subr.bf16.mxu0 0
      %1000 = vmatpush1.bf16.msra.mxu0 %v977
      %1001 = vmatprep.subr.bf16.mxu0 0
      %1002 = vmatpush1.bf16.msra.mxu0 %v978
      %1003 = vmatprep.subr.bf16.mxu0 0
      %1004 = vmatpush1.bf16.msra.mxu0 0
      %1005 = vmatprep.subr.bf16.mxu0 0
      %1006 = vmatpush1.bf16.msra.mxu0 0
      %1007 = vmatprep.subr.bf16.mxu0 0
      %1008 = vmatpush1.bf16.msra.mxu0 0
      %1009 = vmatprep.subr.bf16.mxu0 0
      %1010 = vmatpush1.bf16.msra.mxu0 0
      %1011 = vmatprep.subr.bf16.mxu0 0
      %1012 = vmatpush1.bf16.msra.mxu0 0
      %1013 = vmatprep.subr.bf16.mxu0 0
      %1014 = vmatpush1.bf16.msra.mxu0 0
      %1015 = vmatprep.subr.bf16.mxu0 0
      %1016 = vmatpush1.bf16.msra.mxu0 0
      %1017 = vmatprep.subr.bf16.mxu0 0
      %1018 = vmatpush1.bf16.msra.mxu0 0
      %1019 = vmatprep.mubr.bf16.mxu0 0
      %1020 = vmatmul.mubr.bf16.gmra.mrb[0].mxu0 %v886
      %v1021 = vpop.f32.mrb[0].mxu0
      %v1022 = vadd.f32 %v938, %v1021
      %v1023 = vpop.f32.mrb[0].mxu0
      %v1024 = vpop.f32.mrb[0].mxu0
      %v1025 = vadd.f32 %v938, %v1024
      %v1026 = vpop.f32.mrb[0].mxu0
      %1027 = vmatprep.mubr.bf16.mxu0 0
      %1028 = vmatmul.mubr.bf16.gmra.mrb[0].mxu0 %v887
      %v1029 = vpop.f32.mrb[0].mxu0
      %v1030 = vadd.f32 %v938, %v1029
      %v1031 = vpop.f32.mrb[0].mxu0
      %v1032 = vpop.f32.mrb[0].mxu0
      %v1033 = vadd.f32 %v938, %v1032
      %v1034 = vpop.f32.mrb[0].mxu0
      %1035 = vmatprep.mubr.bf16.mxu0 0
      %1036 = vmatmul.mubr.bf16.gmra.mrb[0].mxu0 %v888
      %v1037 = vpop.f32.mrb[0].mxu0
      %v1038 = vadd.f32 %v938, %v1037
      %v1039 = vpop.f32.mrb[0].mxu0
      %v1040 = vpop.f32.mrb[0].mxu0
      %v1041 = vadd.f32 %v938, %v1040
      %v1042 = vpop.f32.mrb[0].mxu0
      %1043 = vmatprep.mubr.bf16.mxu0 0
      %1044 = vmatmul.mubr.bf16.gmra.mrb[0].mxu0 %v889
      %v1045 = vpop.f32.mrb[0].mxu0
      %v1046 = vadd.f32 %v938, %v1045
      %v1047 = vpop.f32.mrb[0].mxu0
      %v1048 = vpop.f32.mrb[0].mxu0
      %v1049 = vadd.f32 %v938, %v1048
      %v1050 = vpop.f32.mrb[0].mxu0
      %1051 = vmatprep.mubr.bf16.mxu0 0
      %1052 = vmatmul.mubr.bf16.gmra.mrb[0].mxu0 %v890
      %v1053 = vpop.f32.mrb[0].mxu0
      %v1054 = vadd.f32 %v938, %v1053
      %v1055 = vpop.f32.mrb[0].mxu0
      %v1056 = vpop.f32.mrb[0].mxu0
      %v1057 = vadd.f32 %v938, %v1056
      %v1058 = vpop.f32.mrb[0].mxu0
      %1059 = vmatprep.mubr.bf16.mxu0 0
      %1060 = vmatmul.mubr.bf16.gmra.mrb[0].mxu0 %v891
      %v1061 = vpop.f32.mrb[0].mxu0
      %v1062 = vadd.f32 %v938, %v1061
      %v1063 = vpop.f32.mrb[0].mxu0
      %v1064 = vpop.f32.mrb[0].mxu0
      %v1065 = vadd.f32 %v938, %v1064
      %v1066 = vpop.f32.mrb[0].mxu0
      %1067 = vmatprep.mubr.bf16.mxu0 0
      %1068 = vmatmul.mubr.bf16.gmra.mrb[0].mxu0 %v892
      %v1069 = vpop.f32.mrb[0].mxu0
      %v1070 = vadd.f32 %v938, %v1069
      %v1071 = vpop.f32.mrb[0].mxu0
      %v1072 = vpop.f32.mrb[0].mxu0
      %v1073 = vadd.f32 %v938, %v1072
      %v1074 = vpop.f32.mrb[0].mxu0
      %1075 = vmatprep.mubr.bf16.mxu0 0
      %1076 = vmatmul.mubr.bf16.gmra.mrb[0].mxu0 %v893
      %v1077 = vpop.f32.mrb[0].mxu0
      %v1078 = vadd.f32 %v938, %v1077
      %v1079 = vpop.f32.mrb[0].mxu0
      %v1080 = vpop.f32.mrb[0].mxu0
      %v1081 = vadd.f32 %v938, %v1080
      %v1082 = vpop.f32.mrb[0].mxu0
      %1083 = vmatprep.mubr.bf16.mxu0 0
      %1084 = vmatmul.mubr.bf16.gmra.mrb[0].mxu0 %v894
      %v1085 = vpop.f32.mrb[0].mxu0
      %v1086 = vadd.f32 %v938, %v1085
      %v1087 = vpop.f32.mrb[0].mxu0
      %v1088 = vpop.f32.mrb[0].mxu0
      %v1089 = vadd.f32 %v938, %v1088
      %v1090 = vpop.f32.mrb[0].mxu0
      %1091 = vmatprep.mubr.bf16.mxu0 0
      %1092 = vmatmul.mubr.bf16.gmra.mrb[0].mxu0 %v895
      %v1093 = vpop.f32.mrb[0].mxu0
      %v1094 = vadd.f32 %v938, %v1093
      %v1095 = vpop.f32.mrb[0].mxu0
      %v1096 = vpop.f32.mrb[0].mxu0
      %v1097 = vadd.f32 %v938, %v1096
      %v1098 = vpop.f32.mrb[0].mxu0
      %1099 = vmatprep.mubr.bf16.mxu0 0
      %1100 = vmatmul.mubr.bf16.gmra.mrb[0].mxu0 %v896
      %v1101 = vpop.f32.mrb[0].mxu0
      %v1102 = vadd.f32 %v938, %v1101
      %v1103 = vpop.f32.mrb[0].mxu0
      %v1104 = vpop.f32.mrb[0].mxu0
      %v1105 = vadd.f32 %v938, %v1104
      %v1106 = vpop.f32.mrb[0].mxu0
      %1107 = vmatprep.mubr.bf16.mxu0 0
      %1108 = vmatmul.mubr.bf16.gmra.mrb[0].mxu0 %v897
      %v1109 = vpop.f32.mrb[0].mxu0
      %v1110 = vadd.f32 %v938, %v1109
      %v1111 = vpop.f32.mrb[0].mxu0
      %v1112 = vpop.f32.mrb[0].mxu0
      %v1113 = vadd.f32 %v938, %v1112
      %v1114 = vpop.f32.mrb[0].mxu0
      %1115 = vmatprep.mubr.bf16.mxu0 0
      %1116 = vmatmul.mubr.bf16.gmra.mrb[0].mxu0 %v898
      %v1117 = vpop.f32.mrb[0].mxu0
      %v1118 = vadd.f32 %v938, %v1117
      %v1119 = vpop.f32.mrb[0].mxu0
      %v1120 = vpop.f32.mrb[0].mxu0
      %v1121 = vadd.f32 %v938, %v1120
      %v1122 = vpop.f32.mrb[0].mxu0
      %1123 = vmatprep.mubr.bf16.mxu0 0
      %1124 = vmatmul.mubr.bf16.gmra.mrb[0].mxu0 %v899
      %v1125 = vpop.f32.mrb[0].mxu0
      %v1126 = vadd.f32 %v938, %v1125
      %v1127 = vpop.f32.mrb[0].mxu0
      %v1128 = vpop.f32.mrb[0].mxu0
      %v1129 = vadd.f32 %v938, %v1128
      %v1130 = vpop.f32.mrb[0].mxu0
      %1131 = vmatprep.mubr.bf16.mxu0 0
      %1132 = vmatmul.mubr.bf16.gmra.mrb[0].mxu0 %v900
      %v1133 = vpop.f32.mrb[0].mxu0
      %v1134 = vadd.f32 %v938, %v1133
      %v1135 = vpop.f32.mrb[0].mxu0
      %v1136 = vpop.f32.mrb[0].mxu0
      %v1137 = vadd.f32 %v938, %v1136
      %v1138 = vpop.f32.mrb[0].mxu0
      %1139 = vmatprep.mubr.bf16.mxu0 0
      %1140 = vmatmul.mubr.bf16.gmra.mrb[0].mxu0 %v901
      %v1141 = vpop.f32.mrb[0].mxu0
      %v1142 = vadd.f32 %v938, %v1141
      %v1143 = vpop.f32.mrb[0].mxu0
      %v1144 = vpop.f32.mrb[0].mxu0
      %v1145 = vadd.f32 %v938, %v1144
      %v1146 = vpop.f32.mrb[0].mxu0
      %1147 = vmatprep.mubr.bf16.mxu0 0
      %1148 = vmatmul.mubr.bf16.gmra.mrb[0].mxu0 %v902
      %v1149 = vpop.f32.mrb[0].mxu0
      %v1150 = vadd.f32 %v938, %v1149
      %v1151 = vpop.f32.mrb[0].mxu0
      %v1152 = vpop.f32.mrb[0].mxu0
      %v1153 = vadd.f32 %v938, %v1152
      %v1154 = vpop.f32.mrb[0].mxu0
      %1155 = vmatprep.mubr.bf16.mxu0 0
      %1156 = vmatmul.mubr.bf16.gmra.mrb[0].mxu0 %v903
      %v1157 = vpop.f32.mrb[0].mxu0
      %v1158 = vadd.f32 %v938, %v1157
      %v1159 = vpop.f32.mrb[0].mxu0
      %v1160 = vpop.f32.mrb[0].mxu0
      %v1161 = vadd.f32 %v938, %v1160
      %v1162 = vpop.f32.mrb[0].mxu0
      %1163 = vmatprep.mubr.bf16.mxu0 0
      %1164 = vmatmul.mubr.bf16.gmra.mrb[0].mxu0 %v904
      %v1165 = vpop.f32.mrb[0].mxu0
      %v1166 = vadd.f32 %v938, %v1165
      %v1167 = vpop.f32.mrb[0].mxu0
      %v1168 = vpop.f32.mrb[0].mxu0
      %v1169 = vadd.f32 %v938, %v1168
      %v1170 = vpop.f32.mrb[0].mxu0
      %1171 = vmatprep.mubr.bf16.mxu0 0
      %1172 = vmatmul.mubr.bf16.gmra.mrb[0].mxu0 %v905
      %v1173 = vpop.f32.mrb[0].mxu0
      %v1174 = vadd.f32 %v938, %v1173
      %v1175 = vpop.f32.mrb[0].mxu0
      %v1176 = vpop.f32.mrb[0].mxu0
      %v1177 = vadd.f32 %v938, %v1176
      %v1178 = vpop.f32.mrb[0].mxu0
      %1179 = vmatprep.mubr.bf16.mxu0 0
      %1180 = vmatmul.mubr.bf16.gmra.mrb[0].mxu0 %v906
      %v1181 = vpop.f32.mrb[0].mxu0
      %v1182 = vadd.f32 %v938, %v1181
      %v1183 = vpop.f32.mrb[0].mxu0
      %v1184 = vpop.f32.mrb[0].mxu0
      %v1185 = vadd.f32 %v938, %v1184
      %v1186 = vpop.f32.mrb[0].mxu0
      %1187 = vmatprep.mubr.bf16.mxu0 0
      %1188 = vmatmul.mubr.bf16.gmra.mrb[0].mxu0 %v907
      %v1189 = vpop.f32.mrb[0].mxu0
      %v1190 = vadd.f32 %v938, %v1189
      %v1191 = vpop.f32.mrb[0].mxu0
      %v1192 = vpop.f32.mrb[0].mxu0
      %v1193 = vadd.f32 %v938, %v1192
      %v1194 = vpop.f32.mrb[0].mxu0
      %1195 = vmatprep.mubr.bf16.mxu0 0
      %1196 = vmatmul.mubr.bf16.gmra.mrb[0].mxu0 %v908
      %v1197 = vpop.f32.mrb[0].mxu0
      %v1198 = vadd.f32 %v938, %v1197
      %v1199 = vpop.f32.mrb[0].mxu0
      %v1200 = vpop.f32.mrb[0].mxu0
      %v1201 = vadd.f32 %v938, %v1200
      %v1202 = vpop.f32.mrb[0].mxu0
      %1203 = vmatprep.mubr.bf16.mxu0 0
      %1204 = vmatmul.mubr.bf16.gmra.mrb[0].mxu0 %v909
      %v1205 = vpop.f32.mrb[0].mxu0
      %v1206 = vadd.f32 %v938, %v1205
      %v1207 = vpop.f32.mrb[0].mxu0
      %v1208 = vpop.f32.mrb[0].mxu0
      %v1209 = vadd.f32 %v938, %v1208
      %v1210 = vpop.f32.mrb[0].mxu0
      %1211 = vmatprep.mubr.bf16.mxu0 0
      %1212 = vmatmul.mubr.bf16.gmra.mrb[0].mxu0 %v910
      %v1213 = vpop.f32.mrb[0].mxu0
      %v1214 = vadd.f32 %v938, %v1213
      %v1215 = vpop.f32.mrb[0].mxu0
      %v1216 = vpop.f32.mrb[0].mxu0
      %v1217 = vadd.f32 %v938, %v1216
      %v1218 = vpop.f32.mrb[0].mxu0
      %1219 = vmatprep.mubr.bf16.mxu0 0
      %1220 = vmatmul.mubr.bf16.gmra.mrb[0].mxu0 %v911
      %v1221 = vpop.f32.mrb[0].mxu0
      %v1222 = vadd.f32 %v938, %v1221
      %v1223 = vpop.f32.mrb[0].mxu0
      %v1224 = vpop.f32.mrb[0].mxu0
      %v1225 = vadd.f32 %v938, %v1224
      %v1226 = vpop.f32.mrb[0].mxu0
      %1227 = vmatprep.mubr.bf16.mxu0 0
      %1228 = vmatmul.mubr.bf16.gmra.mrb[0].mxu0 %v912
      %v1229 = vpop.f32.mrb[0].mxu0
      %v1230 = vadd.f32 %v938, %v1229
      %v1231 = vpop.f32.mrb[0].mxu0
      %v1232 = vpop.f32.mrb[0].mxu0
      %v1233 = vadd.f32 %v938, %v1232
      %v1234 = vpop.f32.mrb[0].mxu0
      %1235 = vmatprep.mubr.bf16.mxu0 0
      %1236 = vmatmul.mubr.bf16.gmra.mrb[0].mxu0 %v913
      %v1237 = vpop.f32.mrb[0].mxu0
      %v1238 = vadd.f32 %v938, %v1237
      %v1239 = vpop.f32.mrb[0].mxu0
      %v1240 = vpop.f32.mrb[0].mxu0
      %v1241 = vadd.f32 %v938, %v1240
      %v1242 = vpop.f32.mrb[0].mxu0
      %1243 = vmatprep.mubr.bf16.mxu0 0
      %1244 = vmatmul.mubr.bf16.gmra.mrb[0].mxu0 %v914
      %v1245 = vpop.f32.mrb[0].mxu0
      %v1246 = vadd.f32 %v938, %v1245
      %v1247 = vpop.f32.mrb[0].mxu0
      %v1248 = vpop.f32.mrb[0].mxu0
      %v1249 = vadd.f32 %v938, %v1248
      %v1250 = vpop.f32.mrb[0].mxu0
      %1251 = vmatprep.mubr.bf16.mxu0 0
      %1252 = vmatmul.mubr.bf16.gmra.mrb[0].mxu0 %v915
      %v1253 = vpop.f32.mrb[0].mxu0
      %v1254 = vadd.f32 %v938, %v1253
      %v1255 = vpop.f32.mrb[0].mxu0
      %v1256 = vpop.f32.mrb[0].mxu0
      %v1257 = vadd.f32 %v938, %v1256
      %v1258 = vpop.f32.mrb[0].mxu0
      %1259 = vmatprep.mubr.bf16.mxu0 0
      %1260 = vmatmul.mubr.bf16.gmra.mrb[0].mxu0 %v916
      %v1261 = vpop.f32.mrb[0].mxu0
      %v1262 = vadd.f32 %v938, %v1261
      %v1263 = vpop.f32.mrb[0].mxu0
      %v1264 = vpop.f32.mrb[0].mxu0
      %v1265 = vadd.f32 %v938, %v1264
      %v1266 = vpop.f32.mrb[0].mxu0
      %1267 = vmatprep.mubr.bf16.mxu0 0
      %1268 = vmatmul.mubr.bf16.gmra.mrb[0].mxu0 %v917
      %v1269 = vpop.f32.mrb[0].mxu0
      %v1270 = vadd.f32 %v938, %v1269
      %v1271 = vpop.f32.mrb[0].mxu0
      %v1272 = vpop.f32.mrb[0].mxu0
      %v1273 = vadd.f32 %v938, %v1272
      %v1274 = vpop.f32.mrb[0].mxu0
      %1275 = vdwg.mxu0
      %v1276 = vmax.f32 %v1022, 0.0
      %v1277 = vmax.f32 %v1025, 0.0
      %v1278 = vmax.f32 %v1030, 0.0
      %v1279 = vmax.f32 %v1033, 0.0
      %v1280 = vmax.f32 %v1038, 0.0
      %v1281 = vmax.f32 %v1041, 0.0
      %v1282 = vmax.f32 %v1046, 0.0
      %v1283 = vmax.f32 %v1049, 0.0
      %v1284 = vmax.f32 %v1054, 0.0
      %v1285 = vmax.f32 %v1057, 0.0
      %v1286 = vmax.f32 %v1062, 0.0
      %v1287 = vmax.f32 %v1065, 0.0
      %v1288 = vmax.f32 %v1070, 0.0
      %v1289 = vmax.f32 %v1073, 0.0
      %v1290 = vmax.f32 %v1078, 0.0
      %v1291 = vmax.f32 %v1081, 0.0
      %v1292 = vmax.f32 %v1086, 0.0
      %v1293 = vmax.f32 %v1089, 0.0
      %v1294 = vmax.f32 %v1094, 0.0
      %v1295 = vmax.f32 %v1097, 0.0
      %v1296 = vmax.f32 %v1102, 0.0
      %v1297 = vmax.f32 %v1105, 0.0
      %v1298 = vmax.f32 %v1110, 0.0
      %v1299 = vmax.f32 %v1113, 0.0
      %v1300 = vmax.f32 %v1118, 0.0
      %v1301 = vmax.f32 %v1121, 0.0
      %v1302 = vmax.f32 %v1126, 0.0
      %v1303 = vmax.f32 %v1129, 0.0
      %v1304 = vmax.f32 %v1134, 0.0
      %v1305 = vmax.f32 %v1137, 0.0
      %v1306 = vmax.f32 %v1142, 0.0
      %v1307 = vmax.f32 %v1145, 0.0
      %v1308 = vmax.f32 %v1150, 0.0
      %v1309 = vmax.f32 %v1153, 0.0
      %v1310 = vmax.f32 %v1158, 0.0
      %v1311 = vmax.f32 %v1161, 0.0
      %v1312 = vmax.f32 %v1166, 0.0
      %v1313 = vmax.f32 %v1169, 0.0
      %v1314 = vmax.f32 %v1174, 0.0
      %v1315 = vmax.f32 %v1177, 0.0
      %v1316 = vmax.f32 %v1182, 0.0
      %v1317 = vmax.f32 %v1185, 0.0
      %v1318 = vmax.f32 %v1190, 0.0
      %v1319 = vmax.f32 %v1193, 0.0
      %v1320 = vmax.f32 %v1198, 0.0
      %v1321 = vmax.f32 %v1201, 0.0
      %v1322 = vmax.f32 %v1206, 0.0
      %v1323 = vmax.f32 %v1209, 0.0
      %v1324 = vmax.f32 %v1214, 0.0
      %v1325 = vmax.f32 %v1217, 0.0
      %v1326 = vmax.f32 %v1222, 0.0
      %v1327 = vmax.f32 %v1225, 0.0
      %v1328 = vmax.f32 %v1230, 0.0
      %v1329 = vmax.f32 %v1233, 0.0
      %v1330 = vmax.f32 %v1238, 0.0
      %v1331 = vmax.f32 %v1241, 0.0
      %v1332 = vmax.f32 %v1246, 0.0
      %v1333 = vmax.f32 %v1249, 0.0
      %v1334 = vmax.f32 %v1254, 0.0
      %v1335 = vmax.f32 %v1257, 0.0
      %v1336 = vmax.f32 %v1262, 0.0
      %v1337 = vmax.f32 %v1265, 0.0
      %v1338 = vmax.f32 %v1270, 0.0
      %v1339 = vmax.f32 %v1273, 0.0
      %v1340 = vpack.c.bf16 %v1277, %v1276
      %v1341 = vpack.c.bf16 %v1279, %v1278
      %v1342 = vpack.c.bf16 %v1281, %v1280
      %v1343 = vpack.c.bf16 %v1283, %v1282
      %v1344 = vpack.c.bf16 %v1285, %v1284
      %v1345 = vpack.c.bf16 %v1287, %v1286
      %v1346 = vpack.c.bf16 %v1289, %v1288
      %v1347 = vpack.c.bf16 %v1291, %v1290
      %v1348 = vpack.c.bf16 %v1293, %v1292
      %v1349 = vpack.c.bf16 %v1295, %v1294
      %v1350 = vpack.c.bf16 %v1297, %v1296
      %v1351 = vpack.c.bf16 %v1299, %v1298
      %v1352 = vpack.c.bf16 %v1301, %v1300
      %v1353 = vpack.c.bf16 %v1303, %v1302
      %v1354 = vpack.c.bf16 %v1305, %v1304
      %v1355 = vpack.c.bf16 %v1307, %v1306
      %v1356 = vpack.c.bf16 %v1309, %v1308
      %v1357 = vpack.c.bf16 %v1311, %v1310
      %v1358 = vpack.c.bf16 %v1313, %v1312
      %v1359 = vpack.c.bf16 %v1315, %v1314
      %v1360 = vpack.c.bf16 %v1317, %v1316
      %v1361 = vpack.c.bf16 %v1319, %v1318
      %v1362 = vpack.c.bf16 %v1321, %v1320
      %v1363 = vpack.c.bf16 %v1323, %v1322
      %v1364 = vpack.c.bf16 %v1325, %v1324
      %v1365 = vpack.c.bf16 %v1327, %v1326
      %v1366 = vpack.c.bf16 %v1329, %v1328
      %v1367 = vpack.c.bf16 %v1331, %v1330
      %v1368 = vpack.c.bf16 %v1333, %v1332
      %v1369 = vpack.c.bf16 %v1335, %v1334
      %v1370 = vpack.c.bf16 %v1337, %v1336
      %v1371 = vpack.c.bf16 %v1339, %v1338
      %s1372 = scalar_lea.vmem %s1, 128
      %v1373 = vld [vmem:[%s1372] sm:$0xf]
      %v1374 = vld [vmem:[%s1372 + $0x4] sm:$0xf]
      %v1375 = vld [vmem:[%s1372 + $0x8] sm:$0xf]
      %v1376 = vld [vmem:[%s1372 + $0xc] sm:$0xf]
      %v1377 = vld [vmem:[%s1372 + $0x10] sm:$0xf]
      %v1378 = vld [vmem:[%s1372 + $0x14] sm:$0xf]
      %v1379 = vld [vmem:[%s1372 + $0x18] sm:$0xf]
      %v1380 = vld [vmem:[%s1372 + $0x1c] sm:$0xf]
      %v1381 = vld [vmem:[%s1372 + $0x20] sm:$0xf]
      %v1382 = vld [vmem:[%s1372 + $0x24] sm:$0xf]
      %v1383 = vld [vmem:[%s1372 + $0x28] sm:$0xf]
      %v1384 = vld [vmem:[%s1372 + $0x2c] sm:$0xf]
      %v1385 = vld [vmem:[%s1372 + $0x30] sm:$0xf]
      %v1386 = vld [vmem:[%s1372 + $0x34] sm:$0xf]
      %v1387 = vld [vmem:[%s1372 + $0x38] sm:$0xf]
      %v1388 = vld [vmem:[%s1372 + $0x3c] sm:$0xf]
      %v1389 = vlaneseq
      %v1390 = vshrl.u32 %v1389, 7
      %v1391 = vsub.s32 2, %v1390
      %v1392 = vrot.slane %v432, %v1391
      %v1409 = vunpack.c.l.b16 %v1373
      %v1410 = vunpack.c.l.b16 %v1374
      %v1411 = vunpack.c.l.b16 %v1375
      %v1412 = vunpack.c.l.b16 %v1376
      %v1413 = vunpack.c.l.b16 %v1377
      %v1414 = vunpack.c.l.b16 %v1378
      %v1415 = vunpack.c.l.b16 %v1379
      %v1416 = vunpack.c.l.b16 %v1380
      %v1417 = vunpack.c.l.b16 %v1381
      %v1418 = vunpack.c.l.b16 %v1382
      %v1419 = vunpack.c.l.b16 %v1383
      %v1420 = vunpack.c.l.b16 %v1384
      %v1421 = vunpack.c.l.b16 %v1385
      %v1422 = vunpack.c.l.b16 %v1386
      %v1423 = vunpack.c.l.b16 %v1387
      %v1424 = vunpack.c.l.b16 %v1388
      %v1425 = vpack.c.b16 %v1410, %v1409
      %v1426 = vpack.c.b16 %v1412, %v1411
      %v1427 = vpack.c.b16 %v1414, %v1413
      %v1428 = vpack.c.b16 %v1416, %v1415
      %v1429 = vpack.c.b16 %v1418, %v1417
      %v1430 = vpack.c.b16 %v1420, %v1419
      %v1431 = vpack.c.b16 %v1422, %v1421
      %v1432 = vpack.c.b16 %v1424, %v1423
      %1441 = vmatprep.subr.bf16.mxu0 0
      %1442 = vmatpush1.bf16.msra.mxu0 %v1425
      %1443 = vmatprep.subr.bf16.mxu0 0
      %1444 = vmatpush1.bf16.msra.mxu0 %v1426
      %1445 = vmatprep.subr.bf16.mxu0 0
      %1446 = vmatpush1.bf16.msra.mxu0 %v1427
      %1447 = vmatprep.subr.bf16.mxu0 0
      %1448 = vmatpush1.bf16.msra.mxu0 %v1428
      %1449 = vmatprep.subr.bf16.mxu0 0
      %1450 = vmatpush1.bf16.msra.mxu0 %v1429
      %1451 = vmatprep.subr.bf16.mxu0 0
      %1452 = vmatpush1.bf16.msra.mxu0 %v1430
      %1453 = vmatprep.subr.bf16.mxu0 0
      %1454 = vmatpush1.bf16.msra.mxu0 %v1431
      %1455 = vmatprep.subr.bf16.mxu0 0
      %1456 = vmatpush1.bf16.msra.mxu0 %v1432
      %1457 = vmatprep.subr.bf16.mxu0 0
      %1458 = vmatpush1.bf16.msra.mxu0 0
      %1459 = vmatprep.subr.bf16.mxu0 0
      %1460 = vmatpush1.bf16.msra.mxu0 0
      %1461 = vmatprep.subr.bf16.mxu0 0
      %1462 = vmatpush1.bf16.msra.mxu0 0
      %1463 = vmatprep.subr.bf16.mxu0 0
      %1464 = vmatpush1.bf16.msra.mxu0 0
      %1465 = vmatprep.subr.bf16.mxu0 0
      %1466 = vmatpush1.bf16.msra.mxu0 0
      %1467 = vmatprep.subr.bf16.mxu0 0
      %1468 = vmatpush1.bf16.msra.mxu0 0
      %1469 = vmatprep.subr.bf16.mxu0 0
      %1470 = vmatpush1.bf16.msra.mxu0 0
      %1471 = vmatprep.subr.bf16.mxu0 0
      %1472 = vmatpush1.bf16.msra.mxu0 0
      %1473 = vmatprep.mubr.bf16.mxu0 0
      %1474 = vmatmul.mubr.bf16.gmra.mrb[0].mxu0 %v1340
      %v1475 = vpop.f32.mrb[0].mxu0
      %v1476 = vadd.f32 %v1392, %v1475
      %v1477 = vpop.f32.mrb[0].mxu0
      %v1478 = vpop.f32.mrb[0].mxu0
      %v1479 = vadd.f32 %v1392, %v1478
      %v1480 = vpop.f32.mrb[0].mxu0
      %1481 = vmatprep.mubr.bf16.mxu0 0
      %1482 = vmatmul.mubr.bf16.gmra.mrb[0].mxu0 %v1341
      %v1483 = vpop.f32.mrb[0].mxu0
      %v1484 = vadd.f32 %v1392, %v1483
      %v1485 = vpop.f32.mrb[0].mxu0
      %v1486 = vpop.f32.mrb[0].mxu0
      %v1487 = vadd.f32 %v1392, %v1486
      %v1488 = vpop.f32.mrb[0].mxu0
      %1489 = vmatprep.mubr.bf16.mxu0 0
      %1490 = vmatmul.mubr.bf16.gmra.mrb[0].mxu0 %v1342
      %v1491 = vpop.f32.mrb[0].mxu0
      %v1492 = vadd.f32 %v1392, %v1491
      %v1493 = vpop.f32.mrb[0].mxu0
      %v1494 = vpop.f32.mrb[0].mxu0
      %v1495 = vadd.f32 %v1392, %v1494
      %v1496 = vpop.f32.mrb[0].mxu0
      %1497 = vmatprep.mubr.bf16.mxu0 0
      %1498 = vmatmul.mubr.bf16.gmra.mrb[0].mxu0 %v1343
      %v1499 = vpop.f32.mrb[0].mxu0
      %v1500 = vadd.f32 %v1392, %v1499
      %v1501 = vpop.f32.mrb[0].mxu0
      %v1502 = vpop.f32.mrb[0].mxu0
      %v1503 = vadd.f32 %v1392, %v1502
      %v1504 = vpop.f32.mrb[0].mxu0
      %1505 = vmatprep.mubr.bf16.mxu0 0
      %1506 = vmatmul.mubr.bf16.gmra.mrb[0].mxu0 %v1344
      %v1507 = vpop.f32.mrb[0].mxu0
      %v1508 = vadd.f32 %v1392, %v1507
      %v1509 = vpop.f32.mrb[0].mxu0
      %v1510 = vpop.f32.mrb[0].mxu0
      %v1511 = vadd.f32 %v1392, %v1510
      %v1512 = vpop.f32.mrb[0].mxu0
      %1513 = vmatprep.mubr.bf16.mxu0 0
      %1514 = vmatmul.mubr.bf16.gmra.mrb[0].mxu0 %v1345
      %v1515 = vpop.f32.mrb[0].mxu0
      %v1516 = vadd.f32 %v1392, %v1515
      %v1517 = vpop.f32.mrb[0].mxu0
      %v1518 = vpop.f32.mrb[0].mxu0
      %v1519 = vadd.f32 %v1392, %v1518
      %v1520 = vpop.f32.mrb[0].mxu0
      %1521 = vmatprep.mubr.bf16.mxu0 0
      %1522 = vmatmul.mubr.bf16.gmra.mrb[0].mxu0 %v1346
      %v1523 = vpop.f32.mrb[0].mxu0
      %v1524 = vadd.f32 %v1392, %v1523
      %v1525 = vpop.f32.mrb[0].mxu0
      %v1526 = vpop.f32.mrb[0].mxu0
      %v1527 = vadd.f32 %v1392, %v1526
      %v1528 = vpop.f32.mrb[0].mxu0
      %1529 = vmatprep.mubr.bf16.mxu0 0
      %1530 = vmatmul.mubr.bf16.gmra.mrb[0].mxu0 %v1347
      %v1531 = vpop.f32.mrb[0].mxu0
      %v1532 = vadd.f32 %v1392, %v1531
      %v1533 = vpop.f32.mrb[0].mxu0
      %v1534 = vpop.f32.mrb[0].mxu0
      %v1535 = vadd.f32 %v1392, %v1534
      %v1536 = vpop.f32.mrb[0].mxu0
      %1537 = vmatprep.mubr.bf16.mxu0 0
      %1538 = vmatmul.mubr.bf16.gmra.mrb[0].mxu0 %v1348
      %v1539 = vpop.f32.mrb[0].mxu0
      %v1540 = vadd.f32 %v1392, %v1539
      %v1541 = vpop.f32.mrb[0].mxu0
      %v1542 = vpop.f32.mrb[0].mxu0
      %v1543 = vadd.f32 %v1392, %v1542
      %v1544 = vpop.f32.mrb[0].mxu0
      %1545 = vmatprep.mubr.bf16.mxu0 0
      %1546 = vmatmul.mubr.bf16.gmra.mrb[0].mxu0 %v1349
      %v1547 = vpop.f32.mrb[0].mxu0
      %v1548 = vadd.f32 %v1392, %v1547
      %v1549 = vpop.f32.mrb[0].mxu0
      %v1550 = vpop.f32.mrb[0].mxu0
      %v1551 = vadd.f32 %v1392, %v1550
      %v1552 = vpop.f32.mrb[0].mxu0
      %1553 = vmatprep.mubr.bf16.mxu0 0
      %1554 = vmatmul.mubr.bf16.gmra.mrb[0].mxu0 %v1350
      %v1555 = vpop.f32.mrb[0].mxu0
      %v1556 = vadd.f32 %v1392, %v1555
      %v1557 = vpop.f32.mrb[0].mxu0
      %v1558 = vpop.f32.mrb[0].mxu0
      %v1559 = vadd.f32 %v1392, %v1558
      %v1560 = vpop.f32.mrb[0].mxu0
      %1561 = vmatprep.mubr.bf16.mxu0 0
      %1562 = vmatmul.mubr.bf16.gmra.mrb[0].mxu0 %v1351
      %v1563 = vpop.f32.mrb[0].mxu0
      %v1564 = vadd.f32 %v1392, %v1563
      %v1565 = vpop.f32.mrb[0].mxu0
      %v1566 = vpop.f32.mrb[0].mxu0
      %v1567 = vadd.f32 %v1392, %v1566
      %v1568 = vpop.f32.mrb[0].mxu0
      %1569 = vmatprep.mubr.bf16.mxu0 0
      %1570 = vmatmul.mubr.bf16.gmra.mrb[0].mxu0 %v1352
      %v1571 = vpop.f32.mrb[0].mxu0
      %v1572 = vadd.f32 %v1392, %v1571
      %v1573 = vpop.f32.mrb[0].mxu0
      %v1574 = vpop.f32.mrb[0].mxu0
      %v1575 = vadd.f32 %v1392, %v1574
      %v1576 = vpop.f32.mrb[0].mxu0
      %1577 = vmatprep.mubr.bf16.mxu0 0
      %1578 = vmatmul.mubr.bf16.gmra.mrb[0].mxu0 %v1353
      %v1579 = vpop.f32.mrb[0].mxu0
      %v1580 = vadd.f32 %v1392, %v1579
      %v1581 = vpop.f32.mrb[0].mxu0
      %v1582 = vpop.f32.mrb[0].mxu0
      %v1583 = vadd.f32 %v1392, %v1582
      %v1584 = vpop.f32.mrb[0].mxu0
      %1585 = vmatprep.mubr.bf16.mxu0 0
      %1586 = vmatmul.mubr.bf16.gmra.mrb[0].mxu0 %v1354
      %v1587 = vpop.f32.mrb[0].mxu0
      %v1588 = vadd.f32 %v1392, %v1587
      %v1589 = vpop.f32.mrb[0].mxu0
      %v1590 = vpop.f32.mrb[0].mxu0
      %v1591 = vadd.f32 %v1392, %v1590
      %v1592 = vpop.f32.mrb[0].mxu0
      %1593 = vmatprep.mubr.bf16.mxu0 0
      %1594 = vmatmul.mubr.bf16.gmra.mrb[0].mxu0 %v1355
      %v1595 = vpop.f32.mrb[0].mxu0
      %v1596 = vadd.f32 %v1392, %v1595
      %v1597 = vpop.f32.mrb[0].mxu0
      %v1598 = vpop.f32.mrb[0].mxu0
      %v1599 = vadd.f32 %v1392, %v1598
      %v1600 = vpop.f32.mrb[0].mxu0
      %1601 = vmatprep.mubr.bf16.mxu0 0
      %1602 = vmatmul.mubr.bf16.gmra.mrb[0].mxu0 %v1356
      %v1603 = vpop.f32.mrb[0].mxu0
      %v1604 = vadd.f32 %v1392, %v1603
      %v1605 = vpop.f32.mrb[0].mxu0
      %v1606 = vpop.f32.mrb[0].mxu0
      %v1607 = vadd.f32 %v1392, %v1606
      %v1608 = vpop.f32.mrb[0].mxu0
      %1609 = vmatprep.mubr.bf16.mxu0 0
      %1610 = vmatmul.mubr.bf16.gmra.mrb[0].mxu0 %v1357
      %v1611 = vpop.f32.mrb[0].mxu0
      %v1612 = vadd.f32 %v1392, %v1611
      %v1613 = vpop.f32.mrb[0].mxu0
      %v1614 = vpop.f32.mrb[0].mxu0
      %v1615 = vadd.f32 %v1392, %v1614
      %v1616 = vpop.f32.mrb[0].mxu0
      %1617 = vmatprep.mubr.bf16.mxu0 0
      %1618 = vmatmul.mubr.bf16.gmra.mrb[0].mxu0 %v1358
      %v1619 = vpop.f32.mrb[0].mxu0
      %v1620 = vadd.f32 %v1392, %v1619
      %v1621 = vpop.f32.mrb[0].mxu0
      %v1622 = vpop.f32.mrb[0].mxu0
      %v1623 = vadd.f32 %v1392, %v1622
      %v1624 = vpop.f32.mrb[0].mxu0
      %1625 = vmatprep.mubr.bf16.mxu0 0
      %1626 = vmatmul.mubr.bf16.gmra.mrb[0].mxu0 %v1359
      %v1627 = vpop.f32.mrb[0].mxu0
      %v1628 = vadd.f32 %v1392, %v1627
      %v1629 = vpop.f32.mrb[0].mxu0
      %v1630 = vpop.f32.mrb[0].mxu0
      %v1631 = vadd.f32 %v1392, %v1630
      %v1632 = vpop.f32.mrb[0].mxu0
      %1633 = vmatprep.mubr.bf16.mxu0 0
      %1634 = vmatmul.mubr.bf16.gmra.mrb[0].mxu0 %v1360
      %v1635 = vpop.f32.mrb[0].mxu0
      %v1636 = vadd.f32 %v1392, %v1635
      %v1637 = vpop.f32.mrb[0].mxu0
      %v1638 = vpop.f32.mrb[0].mxu0
      %v1639 = vadd.f32 %v1392, %v1638
      %v1640 = vpop.f32.mrb[0].mxu0
      %1641 = vmatprep.mubr.bf16.mxu0 0
      %1642 = vmatmul.mubr.bf16.gmra.mrb[0].mxu0 %v1361
      %v1643 = vpop.f32.mrb[0].mxu0
      %v1644 = vadd.f32 %v1392, %v1643
      %v1645 = vpop.f32.mrb[0].mxu0
      %v1646 = vpop.f32.mrb[0].mxu0
      %v1647 = vadd.f32 %v1392, %v1646
      %v1648 = vpop.f32.mrb[0].mxu0
      %1649 = vmatprep.mubr.bf16.mxu0 0
      %1650 = vmatmul.mubr.bf16.gmra.mrb[0].mxu0 %v1362
      %v1651 = vpop.f32.mrb[0].mxu0
      %v1652 = vadd.f32 %v1392, %v1651
      %v1653 = vpop.f32.mrb[0].mxu0
      %v1654 = vpop.f32.mrb[0].mxu0
      %v1655 = vadd.f32 %v1392, %v1654
      %v1656 = vpop.f32.mrb[0].mxu0
      %1657 = vmatprep.mubr.bf16.mxu0 0
      %1658 = vmatmul.mubr.bf16.gmra.mrb[0].mxu0 %v1363
      %v1659 = vpop.f32.mrb[0].mxu0
      %v1660 = vadd.f32 %v1392, %v1659
      %v1661 = vpop.f32.mrb[0].mxu0
      %v1662 = vpop.f32.mrb[0].mxu0
      %v1663 = vadd.f32 %v1392, %v1662
      %v1664 = vpop.f32.mrb[0].mxu0
      %1665 = vmatprep.mubr.bf16.mxu0 0
      %1666 = vmatmul.mubr.bf16.gmra.mrb[0].mxu0 %v1364
      %v1667 = vpop.f32.mrb[0].mxu0
      %v1668 = vadd.f32 %v1392, %v1667
      %v1669 = vpop.f32.mrb[0].mxu0
      %v1670 = vpop.f32.mrb[0].mxu0
      %v1671 = vadd.f32 %v1392, %v1670
      %v1672 = vpop.f32.mrb[0].mxu0
      %1673 = vmatprep.mubr.bf16.mxu0 0
      %1674 = vmatmul.mubr.bf16.gmra.mrb[0].mxu0 %v1365
      %v1675 = vpop.f32.mrb[0].mxu0
      %v1676 = vadd.f32 %v1392, %v1675
      %v1677 = vpop.f32.mrb[0].mxu0
      %v1678 = vpop.f32.mrb[0].mxu0
      %v1679 = vadd.f32 %v1392, %v1678
      %v1680 = vpop.f32.mrb[0].mxu0
      %1681 = vmatprep.mubr.bf16.mxu0 0
      %1682 = vmatmul.mubr.bf16.gmra.mrb[0].mxu0 %v1366
      %v1683 = vpop.f32.mrb[0].mxu0
      %v1684 = vadd.f32 %v1392, %v1683
      %v1685 = vpop.f32.mrb[0].mxu0
      %v1686 = vpop.f32.mrb[0].mxu0
      %v1687 = vadd.f32 %v1392, %v1686
      %v1688 = vpop.f32.mrb[0].mxu0
      %1689 = vmatprep.mubr.bf16.mxu0 0
      %1690 = vmatmul.mubr.bf16.gmra.mrb[0].mxu0 %v1367
      %v1691 = vpop.f32.mrb[0].mxu0
      %v1692 = vadd.f32 %v1392, %v1691
      %v1693 = vpop.f32.mrb[0].mxu0
      %v1694 = vpop.f32.mrb[0].mxu0
      %v1695 = vadd.f32 %v1392, %v1694
      %v1696 = vpop.f32.mrb[0].mxu0
      %1697 = vmatprep.mubr.bf16.mxu0 0
      %1698 = vmatmul.mubr.bf16.gmra.mrb[0].mxu0 %v1368
      %v1699 = vpop.f32.mrb[0].mxu0
      %v1700 = vadd.f32 %v1392, %v1699
      %v1701 = vpop.f32.mrb[0].mxu0
      %v1702 = vpop.f32.mrb[0].mxu0
      %v1703 = vadd.f32 %v1392, %v1702
      %v1704 = vpop.f32.mrb[0].mxu0
      %1705 = vmatprep.mubr.bf16.mxu0 0
      %1706 = vmatmul.mubr.bf16.gmra.mrb[0].mxu0 %v1369
      %v1707 = vpop.f32.mrb[0].mxu0
      %v1708 = vadd.f32 %v1392, %v1707
      %v1709 = vpop.f32.mrb[0].mxu0
      %v1710 = vpop.f32.mrb[0].mxu0
      %v1711 = vadd.f32 %v1392, %v1710
      %v1712 = vpop.f32.mrb[0].mxu0
      %1713 = vmatprep.mubr.bf16.mxu0 0
      %1714 = vmatmul.mubr.bf16.gmra.mrb[0].mxu0 %v1370
      %v1715 = vpop.f32.mrb[0].mxu0
      %v1716 = vadd.f32 %v1392, %v1715
      %v1717 = vpop.f32.mrb[0].mxu0
      %v1718 = vpop.f32.mrb[0].mxu0
      %v1719 = vadd.f32 %v1392, %v1718
      %v1720 = vpop.f32.mrb[0].mxu0
      %1721 = vmatprep.mubr.bf16.mxu0 0
      %1722 = vmatmul.mubr.bf16.gmra.mrb[0].mxu0 %v1371
      %v1723 = vpop.f32.mrb[0].mxu0
      %v1724 = vadd.f32 %v1392, %v1723
      %v1725 = vpop.f32.mrb[0].mxu0
      %v1726 = vpop.f32.mrb[0].mxu0
      %v1727 = vadd.f32 %v1392, %v1726
      %v1728 = vpop.f32.mrb[0].mxu0
      %1729 = vdwg.mxu0
      %vm1730 = vcmask 31744
      %1731 = vst.msk [vmem:[%s172] sm:$0xff] %vm1730, %v1476
      %1732 = vst.msk [vmem:[%s172 + $0x8] sm:$0xff] %vm1730, %v1479
      %1733 = vst.msk [vmem:[%s172 + $0x10] sm:$0xff] %vm1730, %v1484
      %1734 = vst.msk [vmem:[%s172 + $0x18] sm:$0xff] %vm1730, %v1487
      %1735 = vst.msk [vmem:[%s172 + $0x20] sm:$0xff] %vm1730, %v1492
      %1736 = vst.msk [vmem:[%s172 + $0x28] sm:$0xff] %vm1730, %v1495
      %1737 = vst.msk [vmem:[%s172 + $0x30] sm:$0xff] %vm1730, %v1500
      %1738 = vst.msk [vmem:[%s172 + $0x38] sm:$0xff] %vm1730, %v1503
      %1739 = vst.msk [vmem:[%s172 + $0x40] sm:$0xff] %vm1730, %v1508
      %1740 = vst.msk [vmem:[%s172 + $0x48] sm:$0xff] %vm1730, %v1511
      %1741 = vst.msk [vmem:[%s172 + $0x50] sm:$0xff] %vm1730, %v1516
      %1742 = vst.msk [vmem:[%s172 + $0x58] sm:$0xff] %vm1730, %v1519
      %1743 = vst.msk [vmem:[%s172 + $0x60] sm:$0xff] %vm1730, %v1524
      %1744 = vst.msk [vmem:[%s172 + $0x68] sm:$0xff] %vm1730, %v1527
      %1745 = vst.msk [vmem:[%s172 + $0x70] sm:$0xff] %vm1730, %v1532
      %1746 = vst.msk [vmem:[%s172 + $0x78] sm:$0xff] %vm1730, %v1535
      %1747 = vst.msk [vmem:[%s172 + $0x80] sm:$0xff] %vm1730, %v1540
      %1748 = vst.msk [vmem:[%s172 + $0x88] sm:$0xff] %vm1730, %v1543
      %1749 = vst.msk [vmem:[%s172 + $0x90] sm:$0xff] %vm1730, %v1548
      %1750 = vst.msk [vmem:[%s172 + $0x98] sm:$0xff] %vm1730, %v1551
      %1751 = vst.msk [vmem:[%s172 + $0xa0] sm:$0xff] %vm1730, %v1556
      %1752 = vst.msk [vmem:[%s172 + $0xa8] sm:$0xff] %vm1730, %v1559
      %1753 = vst.msk [vmem:[%s172 + $0xb0] sm:$0xff] %vm1730, %v1564
      %1754 = vst.msk [vmem:[%s172 + $0xb8] sm:$0xff] %vm1730, %v1567
      %1755 = vst.msk [vmem:[%s172 + $0xc0] sm:$0xff] %vm1730, %v1572
      %1756 = vst.msk [vmem:[%s172 + $0xc8] sm:$0xff] %vm1730, %v1575
      %1757 = vst.msk [vmem:[%s172 + $0xd0] sm:$0xff] %vm1730, %v1580
      %1758 = vst.msk [vmem:[%s172 + $0xd8] sm:$0xff] %vm1730, %v1583
      %1759 = vst.msk [vmem:[%s172 + $0xe0] sm:$0xff] %vm1730, %v1588
      %1760 = vst.msk [vmem:[%s172 + $0xe8] sm:$0xff] %vm1730, %v1591
      %1761 = vst.msk [vmem:[%s172 + $0xf0] sm:$0xff] %vm1730, %v1596
      %1762 = vst.msk [vmem:[%s172 + $0xf8] sm:$0xff] %vm1730, %v1599
      %1763 = vst.msk [vmem:[%s172 + $0x100] sm:$0xff] %vm1730, %v1604
      %1764 = vst.msk [vmem:[%s172 + $0x108] sm:$0xff] %vm1730, %v1607
      %1765 = vst.msk [vmem:[%s172 + $0x110] sm:$0xff] %vm1730, %v1612
      %1766 = vst.msk [vmem:[%s172 + $0x118] sm:$0xff] %vm1730, %v1615
      %1767 = vst.msk [vmem:[%s172 + $0x120] sm:$0xff] %vm1730, %v1620
      %1768 = vst.msk [vmem:[%s172 + $0x128] sm:$0xff] %vm1730, %v1623
      %1769 = vst.msk [vmem:[%s172 + $0x130] sm:$0xff] %vm1730, %v1628
      %1770 = vst.msk [vmem:[%s172 + $0x138] sm:$0xff] %vm1730, %v1631
      %1771 = vst.msk [vmem:[%s172 + $0x140] sm:$0xff] %vm1730, %v1636
      %1772 = vst.msk [vmem:[%s172 + $0x148] sm:$0xff] %vm1730, %v1639
      %1773 = vst.msk [vmem:[%s172 + $0x150] sm:$0xff] %vm1730, %v1644
      %1774 = vst.msk [vmem:[%s172 + $0x158] sm:$0xff] %vm1730, %v1647
      %1775 = vst.msk [vmem:[%s172 + $0x160] sm:$0xff] %vm1730, %v1652
      %1776 = vst.msk [vmem:[%s172 + $0x168] sm:$0xff] %vm1730, %v1655
      %1777 = vst.msk [vmem:[%s172 + $0x170] sm:$0xff] %vm1730, %v1660
      %1778 = vst.msk [vmem:[%s172 + $0x178] sm:$0xff] %vm1730, %v1663
      %1779 = vst.msk [vmem:[%s172 + $0x180] sm:$0xff] %vm1730, %v1668
      %1780 = vst.msk [vmem:[%s172 + $0x188] sm:$0xff] %vm1730, %v1671
      %1781 = vst.msk [vmem:[%s172 + $0x190] sm:$0xff] %vm1730, %v1676
      %1782 = vst.msk [vmem:[%s172 + $0x198] sm:$0xff] %vm1730, %v1679
      %1783 = vst.msk [vmem:[%s172 + $0x1a0] sm:$0xff] %vm1730, %v1684
      %1784 = vst.msk [vmem:[%s172 + $0x1a8] sm:$0xff] %vm1730, %v1687
      %1785 = vst.msk [vmem:[%s172 + $0x1b0] sm:$0xff] %vm1730, %v1692
      %1786 = vst.msk [vmem:[%s172 + $0x1b8] sm:$0xff] %vm1730, %v1695
      %1787 = vst.msk [vmem:[%s172 + $0x1c0] sm:$0xff] %vm1730, %v1700
      %1788 = vst.msk [vmem:[%s172 + $0x1c8] sm:$0xff] %vm1730, %v1703
      %1789 = vst.msk [vmem:[%s172 + $0x1d0] sm:$0xff] %vm1730, %v1708
      %1790 = vst.msk [vmem:[%s172 + $0x1d8] sm:$0xff] %vm1730, %v1711
      %1791 = vst.msk [vmem:[%s172 + $0x1e0] sm:$0xff] %vm1730, %v1716
      %1792 = vst.msk [vmem:[%s172 + $0x1e8] sm:$0xff] %vm1730, %v1719
      %1793 = vst.msk [vmem:[%s172 + $0x1f0] sm:$0xff] %vm1730, %v1724
      %1794 = vst.msk [vmem:[%s172 + $0x1f8] sm:$0xff] %vm1730, %v1727
      %s1795 = smul.u32 64, %s14
      %p1796 = scmp.lt.s32.totalorder %s1795, 127
      %s1797 = scalar_select %p1796, %s1795, 127
      %s1798 = smul.addr %s1797, 8
      %s1799 = scalar_lea.vmem %s3, %s1798
      // Predicated region
      $region33: #{nn_forward.1} parent=31 // pred_check
        %p1800 = pneg %p100
      $region34: #{nn_forward.1} parent=31 // pred_check_branch
        %1802 = sbr.rel (%p1800) target = $region36
      $region35: #{nn_forward.1} parent=31 // pred_region
        %s1803 = smul.u32 64, %s14
      $region36: #{nn_forward.1} parent=31 // pred_fallthru
        _
    $region32: #{nn_forward.1} parent=5 // pred_fallthru
      _
    %p1804 = scmp.le.s32.totalorder 2, %s9
    // Predicated region
    $region37: #{nn_forward.1} parent=5 // pred_check
      %p1805 = pneg %p1804
    $region38: #{nn_forward.1} parent=5 // pred_check_branch
      %1807 = sbr.rel (%p1805) target = $region40
    $region39: #{nn_forward.1} parent=5 // pred_region
      %s1808 = ssub.s32 %s9, 2
      // Predicated region
      $region41: #{nn_forward.1} parent=39 // pred_check
        %p1809 = pneg %p106
      $region42: #{nn_forward.1} parent=39 // pred_check_branch
        %1811 = sbr.rel (%p1809) target = $region44
      $region43: #{nn_forward.1} parent=39 // pred_region
        %s1812 = smul.u32 64, %s15
        %p1813 = scmp.lt.s32.totalorder %s1812, 127
        %s1814 = scalar_select %p1813, %s1812, 127
        %s1815 = smul.addr %s1814, 8
        %s1816 = scalar_lea.vmem %s3, %s1815
      $region44: #{nn_forward.1} parent=39 // pred_fallthru
        _
    $region40: #{nn_forward.1} parent=5 // pred_fallthru
      _
  $region6: #{nn_forward.1} parent=0 // loop_footer
    %s13 = sadd.s32 1, %s9
  $region7: #{nn_forward.1} parent=0 // loop_footer_branch
    %8 = sbr.rel target = $region3
  $region8: #{nn_forward.1} parent=0 // loop_exit
    _

</llo_original>
